<compile_context>
chip_gen: v5e
topology: v5e:2x2
jax: 0.10.0
libtpu: 0.0.40
codegen_flags: <defaults>
</compile_context>

<pallas_src>
import functools

import jax
import jax.numpy as jnp
from jax.experimental import pallas as pl
from jax.experimental.pallas import tpu as pltpu


# ----------------------------------------------------------------------------
# helpers
# ----------------------------------------------------------------------------
def _round_up(x: int, m: int) -> int:
    return (x + m - 1) // m * m


def _pad_to(arr, shape):
    pads = [(0, s - d) for d, s in zip(arr.shape, shape)]
    if all(p == (0, 0) for p in pads):
        return arr
    return jnp.pad(arr, pads)


def _pick_tile(dim: int, candidates=(512, 256, 128)) -> int:
    # Prefer 512/256 tiles (full MXU width on v6e/v7x); 128 only if forced.
    for c in candidates:
        if dim % c == 0:
            return c
    return dim  # feature dims are pre-padded to 128 multiples; not reached


def _vmem_capacity_bytes() -> int:
    try:
        info = pltpu.get_tpu_info()
        cap = int(getattr(info, "vmem_capacity_bytes"))
        if cap > 0:
            return cap
    except Exception:
        pass
    return 64 * 1024 * 1024  # conservative fallback: v7x per-TensorCore VMEM


def _num_tensorcores() -> int:
    try:
        info = pltpu.get_tpu_info()
        for name in ("num_cores", "num_tensorcores", "tensorcores_per_chip"):
            n = getattr(info, name, None)
            if isinstance(n, int) and n > 0:
                return n
    except Exception:
        pass
    try:
        dev = jax.devices()[0]
        n = getattr(dev, "num_cores", None)
        if isinstance(n, int) and n > 0:
            return n
        kind = str(getattr(dev, "device_kind", "")).lower()
        if any(tag in kind for tag in ("v4", "v5p", "v7")):
            return 2
    except Exception:
        pass
    return 1


def _fused_vmem_estimate(weights, np_: int, tm: int) -> int:
    """VMEM-bytes estimate for the fused path (weights single-buffered)."""
    kp = int(weights[0].shape[0])
    wp = int(weights[0].shape[1])
    w_bytes = sum(int(w.shape[0]) * int(w.shape[1]) for w in weights) * 2  # bf16 scratch, 1x
    x_bytes = 2 * tm * kp * 2          # double-buffered bf16 input tile
    o_bytes = 2 * tm * np_ * 4         # double-buffered f32 output tile
    b_bytes = 2 * 8 * np_ * 4          # tiny bias block
    live = 3 * tm * max(wp, np_) * 4   # f32 intermediates / compiler headroom
    return w_bytes + x_bytes + o_bytes + b_bytes + live


# ----------------------------------------------------------------------------
# Parameter prep: pad + cast ONCE (outside the per-call forward path)
# ----------------------------------------------------------------------------
def prepare_mlp_params(hidden_ws, w_out, b_out):
    n_in = int(hidden_ws[0].shape[0])
    width = int(hidden_ws[0].shape[1])
    n_out = int(w_out.shape[1])
    kp = _round_up(n_in, 128)
    wp = _round_up(width, 128)
    np_ = _round_up(n_out, 128)

    ws = []
    kpad = kp
    for w in hidden_ws:                                   # hidden: bias-free
        ws.append(_pad_to(w, (kpad, wp)).astype(jnp.bfloat16))
        kpad = wp
    ws.append(_pad_to(w_out, (wp, np_)).astype(jnp.bfloat16))
    b = _pad_to(b_out.reshape(1, n_out), (1, np_)).astype(jnp.float32)
    return {"weights": ws, "bias": b, "n_in": n_in, "width": width, "n_out": n_out}


# ----------------------------------------------------------------------------
# Fused whole-MLP kernel: weights single-buffered in VMEM scratch
# ----------------------------------------------------------------------------
def _fused_mlp_kernel(*refs, num_weights: int):
    x_ref = refs[0]
    w_hbm = refs[1:1 + num_weights]                       # HBM weight refs (pl.ANY)
    b_ref = refs[1 + num_weights]
    o_ref = refs[2 + num_weights]
    w_vmem = refs[3 + num_weights:3 + 2 * num_weights]    # VMEM scratch (1x each)
    sem = refs[3 + 2 * num_weights]

    # Each core loads the whole weight stack once (first step of its inner
    # axis); scratch persists across the remaining grid steps on that core.
    @pl.when(pl.program_id(1) == 0)
    def _load_weights():
        copies = [pltpu.make_async_copy(w_hbm[wi], w_vmem[wi], sem.at[wi])
                  for wi in range(num_weights)]
        for c in copies:
            c.start()           # overlap all weight DMAs
        for c in copies:
            c.wait()

    h = x_ref[...]                                        # (tm, Kp) bf16
    for li in range(num_weights - 1):                     # hidden: no bias + SiLU
        a = jnp.dot(h, w_vmem[li][...], preferred_element_type=jnp.float32)
        a = a * jax.nn.sigmoid(a)                         # SiLU in f32 (EUP exp)
        h = a.astype(jnp.bfloat16)
    out = jnp.dot(h, w_vmem[num_weights - 1][...],
                  preferred_element_type=jnp.float32)
    o_ref[...] = (out + b_ref[...]).astype(o_ref.dtype)   # final-layer bias


def mlp_forward_fused(x, params, *, tm=256):
    ws = params["weights"]
    b = params["bias"]
    n_out = params["n_out"]
    num_w = len(ws)
    kp = int(ws[0].shape[0])
    wp = int(ws[0].shape[1])
    np_ = int(ws[-1].shape[1])

    M = int(x.shape[0])
    tm = min(tm, _round_up(M, 16))                        # bf16: 16-row multiple
    m_tiles = -(-M // tm)
    n_outer = 2 if (_num_tensorcores() >= 2 and m_tiles >= 2) else 1
    m_tiles = _round_up(m_tiles, n_outer)
    inner = m_tiles // n_outer
    mp = m_tiles * tm

    x_p = _pad_to(x, (mp, kp)).astype(jnp.bfloat16)

    def xo_map(o, i):
        return (o * inner + i, 0)

    in_specs = [pl.BlockSpec((tm, kp), xo_map)]
    in_specs += [pl.BlockSpec(memory_space=pl.ANY) for _ in ws]   # weights in HBM
    in_specs += [pl.BlockSpec((1, np_), lambda o, i: (0, 0))]     # final bias row

    scratch_shapes = [pltpu.VMEM(tuple(int(d) for d in w.shape), jnp.bfloat16)
                      for w in ws]
    scratch_shapes += [pltpu.SemaphoreType.DMA((num_w,))]

    flops = 2 * mp * sum(int(w.shape[0]) * int(w.shape[1]) for w in ws)
    transcendentals = mp * wp * (num_w - 1)
    bytes_accessed = (x_p.size * 2 + sum(int(w.size) * 2 for w in ws)
                      + int(b.size) * 4 + mp * np_ * 4)

    cap = _vmem_capacity_bytes()
    need = _fused_vmem_estimate(ws, np_, tm)
    vmem_limit = int(min(max(need + (16 << 20), 32 << 20), int(cap * 0.9)))

    kernel = functools.partial(_fused_mlp_kernel, num_weights=num_w)
    out_p = pl.pallas_call(
        kernel,
        out_shape=jax.ShapeDtypeStruct((mp, np_), jnp.float32),
        grid_spec=pltpu.PrefetchScalarGridSpec(
            num_scalar_prefetch=0,
            grid=(n_outer, inner),
            in_specs=in_specs,
            out_specs=pl.BlockSpec((tm, np_), xo_map),
            scratch_shapes=scratch_shapes,
        ),
        compiler_params=pltpu.CompilerParams(
            dimension_semantics=("parallel", "arbitrary"),
            vmem_limit_bytes=vmem_limit,
        ),
        cost_estimate=pl.CostEstimate(
            flops=int(flops),
            transcendentals=int(transcendentals),
            bytes_accessed=int(bytes_accessed),
        ),
    )(x_p, *ws, b)

    return out_p[:M, :n_out]


# ----------------------------------------------------------------------------
# Fallback: per-layer K/N-tiled linear for widths whose weights exceed VMEM
# ----------------------------------------------------------------------------
def _tiled_linear_kernel(*refs, apply_silu: bool, apply_bias: bool):
    if apply_bias:
        x_ref, w_ref, b_ref, o_ref, acc_ref = refs
    else:
        x_ref, w_ref, o_ref, acc_ref = refs
        b_ref = None
    k = pl.program_id(2)

    @pl.when(k == 0)
    def _():
        acc_ref[...] = jnp.zeros_like(acc_ref)

    acc_ref[...] += jnp.dot(x_ref[...], w_ref[...],
                            preferred_element_type=jnp.float32)

    @pl.when(k == pl.num_programs(2) - 1)
    def _():
        acc = acc_ref[...]
        if apply_bias:
            acc = acc + b_ref[...]
        if apply_silu:
            acc = acc * jax.nn.sigmoid(acc)
        o_ref[...] = acc.astype(o_ref.dtype)


def _pallas_linear_tiled(x_p, w_p, b_p, *, apply_silu, out_dtype, tm):
    mp, kp = x_p.shape
    _, np_ = w_p.shape
    tk = _pick_tile(kp)
    tn = _pick_tile(np_)
    apply_bias = b_p is not None

    in_specs = [pl.BlockSpec((tm, tk), lambda i, j, k: (i, k)),
                pl.BlockSpec((tk, tn), lambda i, j, k: (k, j))]
    args = [x_p, w_p]
    if apply_bias:
        in_specs.append(pl.BlockSpec((1, tn), lambda i, j, k: (0, j)))
        args.append(b_p)

    cap = _vmem_capacity_bytes()
    out_isz = jnp.dtype(out_dtype).itemsize
    need = 2 * (tm * tk * 2 + tk * tn * 2 + 8 * tn * 4 + tm * tn * out_isz) + tm * tn * 4
    vmem_limit = int(min(max(need + (8 << 20), 32 << 20), int(cap * 0.9)))

    kernel = functools.partial(_tiled_linear_kernel,
                               apply_silu=apply_silu, apply_bias=apply_bias)
    flops = 2 * mp * kp * np_
    transcendentals = mp * np_ if apply_silu else 0
    bytes_accessed = (int(x_p.size) * x_p.dtype.itemsize
                      + (mp // tm) * int(w_p.size) * 2
                      + (int(b_p.size) * 4 if apply_bias else 0)
                      + mp * np_ * out_isz)

    return pl.pallas_call(
        kernel,
        out_shape=jax.ShapeDtypeStruct((mp, np_), out_dtype),
        grid_spec=pltpu.PrefetchScalarGridSpec(
            num_scalar_prefetch=0,
            grid=(mp // tm, np_ // tn, kp // tk),
            in_specs=in_specs,
            out_specs=pl.BlockSpec((tm, tn), lambda i, j, k: (i, j)),
            scratch_shapes=[pltpu.VMEM((tm, tn), jnp.float32)],
        ),
        compiler_params=pltpu.CompilerParams(
            dimension_semantics=("parallel", "parallel", "arbitrary"),
            vmem_limit_bytes=vmem_limit),
        cost_estimate=pl.CostEstimate(
            flops=int(flops),
            transcendentals=int(transcendentals),
            bytes_accessed=int(bytes_accessed),
        ),
    )(*args)


def mlp_forward_tiled(x, params, *, tm=None):
    # TODO(synk): replace this per-layer path with a single weight-streaming
    # kernel (activation resident in VMEM scratch, emit_pipeline over HBM weight
    # tiles) to remove per-layer HBM activation round-trips and extra launches.
    ws = params["weights"]
    b = params["bias"]
    n_out = params["n_out"]
    kp = int(ws[0].shape[0])
    M = int(x.shape[0])
    if tm is None:
        # Larger M tiles => the (re-streamed) weights are read fewer times.
        tm = 512 if M >= 512 else (256 if M >= 256 else _round_up(M, 16))
    tm = min(tm, _round_up(M, 16))
    mp = _round_up(M, tm)

    h = _pad_to(x, (mp, kp)).astype(jnp.bfloat16)
    for w in ws[:-1]:                     # hidden layers: no bias, SiLU, bf16 out
        h = _pallas_linear_tiled(h, w, None, apply_silu=True,
                                 out_dtype=jnp.bfloat16, tm=tm)
    out_p = _pallas_linear_tiled(h, ws[-1], b, apply_silu=False,
                                 out_dtype=jnp.float32, tm=tm)
    return out_p[:M, :n_out]


# ----------------------------------------------------------------------------
# Public entry point: fused vs tiled, generation-aware VMEM budget
# ----------------------------------------------------------------------------
def mlp_forward(x, params, *, tm=256, force_tiled=False):
    M = int(x.shape[0])
    np_ = int(params["weights"][-1].shape[1])
    tm_eff = min(tm, _round_up(M, 16))
    cap = _vmem_capacity_bytes()
    need = _fused_vmem_estimate(params["weights"], np_, tm_eff)
    if force_tiled or need > int(cap * 0.70):
        return mlp_forward_tiled(x, params, tm=tm_eff)
    return mlp_forward_fused(x, params, tm=tm_eff)


# ----------------------------------------------------------------------------
# Parameter init (matches MLP.__init__ layer shapes; weights stored as (in, out))
# ----------------------------------------------------------------------------
def init_mlp_params(key, n_in: int, n_out: int, width: int, depth: int):
    assert depth >= 2
    hidden_ws = []
    w_in = n_in
    for _ in range(depth - 1):            # Linear(w_in, width, bias=False) + SiLU
        key, kw = jax.random.split(key)
        bound = float(1.0 / (w_in ** 0.5))
        hidden_ws.append(
            jax.random.uniform(kw, (w_in, width), jnp.float32, -bound, bound))
        w_in = width
    key, kw, kb = jax.random.split(key, 3)  # Linear(width, n_out) with bias
    bound = float(1.0 / (w_in ** 0.5))
    w_out = jax.random.uniform(kw, (w_in, n_out), jnp.float32, -bound, bound)
    b_out = jax.random.uniform(kb, (n_out,), jnp.float32, -bound, bound)
    return hidden_ws, w_out, b_out


def mlp_reference(x, hidden_ws, w_out, b_out):
    """Reference with the same bf16-matmul / f32-accumulate numerics as the kernel."""
    h = x.astype(jnp.bfloat16)
    for w in hidden_ws:
        a = jnp.dot(h, w.astype(jnp.bfloat16), preferred_element_type=jnp.float32)
        a = a * jax.nn.sigmoid(a)
        h = a.astype(jnp.bfloat16)
    out = jnp.dot(h, w_out.astype(jnp.bfloat16), preferred_element_type=jnp.float32)
    return out + b_out


if __name__ == "__main__":
    # Small shapes consistent with MLP(n_in, n_out, width, depth)
    batch, n_in, n_out, width, depth = 200, 32, 16, 128, 3

    key = jax.random.PRNGKey(0)
    kx, kparam = jax.random.split(key)
    x = jax.random.normal(kx, (batch, n_in), jnp.float32)
    hidden_ws, w_out, b_out = init_mlp_params(kparam, n_in, n_out, width, depth)

    # Pad + cast weights to bf16 once (reused across forward calls).
    params = prepare_mlp_params(hidden_ws, w_out, b_out)

    # Fused path (default).  tm=128 -> padded M=256 -> >=2 inner grid steps,
    # exercising the "load weights once, reuse across steps" scratch path.
    out_fused = jax.block_until_ready(mlp_forward(x, params, tm=128))
    # Tiled fallback (used automatically for VMEM-exceeding widths); exercised
    # here explicitly to verify it as well.
    out_tiled = jax.block_until_ready(
        mlp_forward(x, params, tm=128, force_tiled=True))

    ref = mlp_reference(x, hidden_ws, w_out, b_out)

    assert out_fused.shape == (batch, n_out)
    assert out_tiled.shape == (batch, n_out)
    assert jnp.allclose(out_fused, ref, atol=2e-2, rtol=2e-2)
    assert jnp.allclose(out_tiled, ref, atol=2e-2, rtol=2e-2)
    assert jnp.allclose(out_fused, out_tiled, atol=2e-2, rtol=2e-2)

    print("KERNEL_OK")
</pallas_src>

<mosaic_0001>
module attributes {stable_mosaic.version = 11 : i64} {
  func.func @_fused_mlp_kernel(%arg0: i32, %arg1: i32, %arg2: memref<128x128xbf16, #tpu.memory_space<vmem>>, %arg3: memref<128x128xbf16, #tpu.memory_space<any>>, %arg4: memref<128x128xbf16, #tpu.memory_space<any>>, %arg5: memref<128x128xbf16, #tpu.memory_space<any>>, %arg6: memref<1x128xf32, #tpu.memory_space<vmem>>, %arg7: memref<128x128xf32, #tpu.memory_space<vmem>>, %arg8: memref<128x128xbf16, #tpu.memory_space<vmem>>, %arg9: memref<128x128xbf16, #tpu.memory_space<vmem>>, %arg10: memref<128x128xbf16, #tpu.memory_space<vmem>>, %arg11: memref<3x!tpu.dma_semaphore, #tpu.memory_space<semaphore_mem>>) attributes {dimension_semantics = [#tpu.dimension_semantics<parallel>, #tpu.dimension_semantics<arbitrary>], iteration_bounds = array<i64: 1, 2>, scalar_prefetch = 0 : i64, scratch_operands = 4 : i64, tpu.core_type = #tpu.core_type<tc>, window_params = [{transform_indices = @transform_0, window_bounds = array<i64: 128, 128>}, {}, {}, {}, {pipeline_mode = #tpu.pipeline_mode<synchronous>, transform_indices = @transform_4, window_bounds = array<i64: 1, 128>}, {transform_indices = @transform_5, window_bounds = array<i64: 128, 128>}]} {
    %c0_i32 = arith.constant 0 : i32
    %0 = arith.cmpi eq, %arg1, %c0_i32 : i32
    %1 = arith.extui %0 : i1 to i32
    %c0_i32_0 = arith.constant 0 : i32
    %2 = arith.cmpi ne, %1, %c0_i32_0 : i32
    scf.if %2 {
      %c0_i32_16 = arith.constant 0 : i32
      %28 = tpu.memref_slice %arg11[%c0_i32_16] : memref<3x!tpu.dma_semaphore, #tpu.memory_space<semaphore_mem>> -> memref<1x!tpu.dma_semaphore, #tpu.memory_space<semaphore_mem>>
      %29 = tpu.memref_squeeze %28 : memref<1x!tpu.dma_semaphore, #tpu.memory_space<semaphore_mem>> -> memref<!tpu.dma_semaphore, #tpu.memory_space<semaphore_mem>>
      tpu.enqueue_dma source(%arg3 : memref<128x128xbf16, #tpu.memory_space<any>>) target(%arg8 : memref<128x128xbf16, #tpu.memory_space<vmem>>) target_semaphore(%29 : memref<!tpu.dma_semaphore, #tpu.memory_space<semaphore_mem>>)
      %c1_i32 = arith.constant 1 : i32
      %30 = tpu.memref_slice %arg11[%c1_i32] : memref<3x!tpu.dma_semaphore, #tpu.memory_space<semaphore_mem>> -> memref<1x!tpu.dma_semaphore, #tpu.memory_space<semaphore_mem>>
      %31 = tpu.memref_squeeze %30 : memref<1x!tpu.dma_semaphore, #tpu.memory_space<semaphore_mem>> -> memref<!tpu.dma_semaphore, #tpu.memory_space<semaphore_mem>>
      tpu.enqueue_dma source(%arg4 : memref<128x128xbf16, #tpu.memory_space<any>>) target(%arg9 : memref<128x128xbf16, #tpu.memory_space<vmem>>) target_semaphore(%31 : memref<!tpu.dma_semaphore, #tpu.memory_space<semaphore_mem>>)
      %c2_i32 = arith.constant 2 : i32
      %32 = tpu.memref_slice %arg11[%c2_i32] : memref<3x!tpu.dma_semaphore, #tpu.memory_space<semaphore_mem>> -> memref<1x!tpu.dma_semaphore, #tpu.memory_space<semaphore_mem>>
      %33 = tpu.memref_squeeze %32 : memref<1x!tpu.dma_semaphore, #tpu.memory_space<semaphore_mem>> -> memref<!tpu.dma_semaphore, #tpu.memory_space<semaphore_mem>>
      tpu.enqueue_dma source(%arg5 : memref<128x128xbf16, #tpu.memory_space<any>>) target(%arg10 : memref<128x128xbf16, #tpu.memory_space<vmem>>) target_semaphore(%33 : memref<!tpu.dma_semaphore, #tpu.memory_space<semaphore_mem>>)
      %c0_i32_17 = arith.constant 0 : i32
      %34 = tpu.memref_slice %arg11[%c0_i32_17] : memref<3x!tpu.dma_semaphore, #tpu.memory_space<semaphore_mem>> -> memref<1x!tpu.dma_semaphore, #tpu.memory_space<semaphore_mem>>
      %35 = tpu.memref_squeeze %34 : memref<1x!tpu.dma_semaphore, #tpu.memory_space<semaphore_mem>> -> memref<!tpu.dma_semaphore, #tpu.memory_space<semaphore_mem>>
      tpu.wait_dma2 semaphore(%35 : memref<!tpu.dma_semaphore, #tpu.memory_space<semaphore_mem>>) src(%arg3 : memref<128x128xbf16, #tpu.memory_space<any>>) dst(%arg8 : memref<128x128xbf16, #tpu.memory_space<vmem>>)
      %c1_i32_18 = arith.constant 1 : i32
      %36 = tpu.memref_slice %arg11[%c1_i32_18] : memref<3x!tpu.dma_semaphore, #tpu.memory_space<semaphore_mem>> -> memref<1x!tpu.dma_semaphore, #tpu.memory_space<semaphore_mem>>
      %37 = tpu.memref_squeeze %36 : memref<1x!tpu.dma_semaphore, #tpu.memory_space<semaphore_mem>> -> memref<!tpu.dma_semaphore, #tpu.memory_space<semaphore_mem>>
      tpu.wait_dma2 semaphore(%37 : memref<!tpu.dma_semaphore, #tpu.memory_space<semaphore_mem>>) src(%arg4 : memref<128x128xbf16, #tpu.memory_space<any>>) dst(%arg9 : memref<128x128xbf16, #tpu.memory_space<vmem>>)
      %c2_i32_19 = arith.constant 2 : i32
      %38 = tpu.memref_slice %arg11[%c2_i32_19] : memref<3x!tpu.dma_semaphore, #tpu.memory_space<semaphore_mem>> -> memref<1x!tpu.dma_semaphore, #tpu.memory_space<semaphore_mem>>
      %39 = tpu.memref_squeeze %38 : memref<1x!tpu.dma_semaphore, #tpu.memory_space<semaphore_mem>> -> memref<!tpu.dma_semaphore, #tpu.memory_space<semaphore_mem>>
      tpu.wait_dma2 semaphore(%39 : memref<!tpu.dma_semaphore, #tpu.memory_space<semaphore_mem>>) src(%arg5 : memref<128x128xbf16, #tpu.memory_space<any>>) dst(%arg10 : memref<128x128xbf16, #tpu.memory_space<vmem>>)
    } else {
    }
    %c0 = arith.constant 0 : index
    %c0_1 = arith.constant 0 : index
    %3 = vector.load %arg2[%c0, %c0_1] : memref<128x128xbf16, #tpu.memory_space<vmem>>, vector<128x128xbf16>
    %c0_2 = arith.constant 0 : index
    %c0_3 = arith.constant 0 : index
    %4 = vector.load %arg8[%c0_2, %c0_3] : memref<128x128xbf16, #tpu.memory_space<vmem>>, vector<128x128xbf16>
    %cst = arith.constant dense<0.000000e+00> : vector<128x128xf32>
    %5 = tpu.matmul %3, %4, %cst {dimension_numbers = #tpu.dot_dimension_numbers<[1], [0], [0], [1], [0, 0, 1, 1], [], []>} : vector<128x128xbf16>, vector<128x128xbf16>, vector<128x128xf32> -> vector<128x128xf32>
    %6 = arith.negf %5 : vector<128x128xf32>
    %7 = math.exp %6 : vector<128x128xf32>
    %cst_4 = arith.constant 1.000000e+00 : f32
    %8 = vector.broadcast %cst_4 : f32 to vector<128x128xf32>
    %9 = arith.addf %8, %7 : vector<128x128xf32>
    %10 = arith.divf %8, %9 : vector<128x128xf32>
    %11 = arith.mulf %5, %10 : vector<128x128xf32>
    %12 = arith.truncf %11 : vector<128x128xf32> to vector<128x128xbf16>
    %c0_5 = arith.constant 0 : index
    %c0_6 = arith.constant 0 : index
    %13 = vector.load %arg9[%c0_5, %c0_6] : memref<128x128xbf16, #tpu.memory_space<vmem>>, vector<128x128xbf16>
    %cst_7 = arith.constant dense<0.000000e+00> : vector<128x128xf32>
    %14 = tpu.matmul %12, %13, %cst_7 {dimension_numbers = #tpu.dot_dimension_numbers<[1], [0], [0], [1], [0, 0, 1, 1], [], []>} : vector<128x128xbf16>, vector<128x128xbf16>, vector<128x128xf32> -> vector<128x128xf32>
    %15 = arith.negf %14 : vector<128x128xf32>
    %16 = math.exp %15 : vector<128x128xf32>
    %cst_8 = arith.constant 1.000000e+00 : f32
    %17 = vector.broadcast %cst_8 : f32 to vector<128x128xf32>
    %18 = arith.addf %17, %16 : vector<128x128xf32>
    %19 = arith.divf %17, %18 : vector<128x128xf32>
    %20 = arith.mulf %14, %19 : vector<128x128xf32>
    %21 = arith.truncf %20 : vector<128x128xf32> to vector<128x128xbf16>
    %c0_9 = arith.constant 0 : index
    %c0_10 = arith.constant 0 : index
    %22 = vector.load %arg10[%c0_9, %c0_10] : memref<128x128xbf16, #tpu.memory_space<vmem>>, vector<128x128xbf16>
    %cst_11 = arith.constant dense<0.000000e+00> : vector<128x128xf32>
    %23 = tpu.matmul %21, %22, %cst_11 {dimension_numbers = #tpu.dot_dimension_numbers<[1], [0], [0], [1], [0, 0, 1, 1], [], []>} : vector<128x128xbf16>, vector<128x128xbf16>, vector<128x128xf32> -> vector<128x128xf32>
    %c0_12 = arith.constant 0 : index
    %c0_13 = arith.constant 0 : index
    %24 = vector.load %arg6[%c0_12, %c0_13] : memref<1x128xf32, #tpu.memory_space<vmem>>, vector<1x128xf32>
    %25 = vector.broadcast %24 : vector<1x128xf32> to vector<128x128xf32>
    %26 = arith.addf %23, %25 : vector<128x128xf32>
    %c0_14 = arith.constant 0 : index
    %c0_15 = arith.constant 0 : index
    %27 = vector.load %arg7[%c0_14, %c0_15] : memref<128x128xf32, #tpu.memory_space<vmem>>, vector<128x128xf32>
    tpu.vector_store %arg7[%c0_14, %c0_15], %26 {strides = array<i32>} : memref<128x128xf32, #tpu.memory_space<vmem>>, vector<128x128xf32>,
    return
  }
  func.func @transform_0(%arg0: i32, %arg1: i32) -> (i32, i32) {
    %c2_i32 = arith.constant 2 : i32
    %0 = arith.muli %arg0, %c2_i32 : i32
    %1 = arith.addi %0, %arg1 : i32
    %c0_i32 = arith.constant 0 : i32
    %c0_i32_0 = arith.constant 0 : i32
    return %1, %c0_i32 : i32, i32
  }
  func.func @transform_4(%arg0: i32, %arg1: i32) -> (i32, i32) {
    %c0_i32 = arith.constant 0 : i32
    %c0_i32_0 = arith.constant 0 : i32
    %c0_i32_1 = arith.constant 0 : i32
    return %c0_i32, %c0_i32_0 : i32, i32
  }
  func.func @transform_5(%arg0: i32, %arg1: i32) -> (i32, i32) {
    %c2_i32 = arith.constant 2 : i32
    %0 = arith.muli %arg0, %c2_i32 : i32
    %1 = arith.addi %0, %arg1 : i32
    %c0_i32 = arith.constant 0 : i32
    %c0_i32_0 = arith.constant 0 : i32
    return %1, %c0_i32 : i32, i32
  }
}

</mosaic_0001>

<llo_original>
// kernel: tpu_custom_call.1
$region0: #{tpu_custom_call.1}
  #allocation0 [shape = 'u32[]', space=smem, size = 0x4, offset = 0x4, fixed_abs, tag = 'smem constant byte address 0x4 - core index']
  #allocation1 [shape = 'u32[72,128]{1,0:T(1,128)}', space=vmem, size = 0x9000, scoped, tag = 'internal scratch']
  #allocation2 [shape = 'bf16[128,128]{1,0:T(8,128)(2,1)}', space=vmem, size = 0x8000, scoped, tag = 'scratch operand']
  #allocation3 [shape = 'bf16[128,128]{1,0:T(8,128)(2,1)}', space=vmem, size = 0x8000, scoped, tag = 'scratch operand']
  #allocation4 [shape = 'bf16[128,128]{1,0:T(8,128)(2,1)}', space=vmem, size = 0x8000, scoped, tag = 'scratch operand']
  #allocation5 [shape = 's32[3]{0}', space=sflag, size = 0xc, scoped, tag = 'scratch operand']
  #allocation10 [shape = 's32[]', space=sflag, size = 0x4, offset = 0, fixed_abs, tag = 'sflag constant byte address 0x0 - dummy sync flag']
  #allocation11 [shape = 's32[]', space=sflag, size = 0x4, offset = 0, fixed_abs, tag = 'sflag constant byte address 0x0 - dummy sync flag']
  #allocation12 [shape = 'u32[]', space=smem, size = 0x4, offset = 0x44, fixed_abs, tag = 'smem constant byte address 0x44 - assertion arg 0']
  #allocation13 [shape = 'u32[]', space=smem, size = 0x4, offset = 0x48, fixed_abs, tag = 'smem constant byte address 0x48 - assertion arg 1']
  #allocation14 [shape = 's32[]', space=sflag, size = 0x4, offset = 0, fixed_abs, tag = 'sflag constant byte address 0x0 - dummy sync flag']
  #allocation15 [shape = 's32[]', space=sflag, size = 0x4, offset = 0, fixed_abs, tag = 'sflag constant byte address 0x0 - dummy sync flag']
  #allocation16 [shape = 's32[]', space=sflag, size = 0x4, offset = 0, fixed_abs, tag = 'sflag constant byte address 0x0 - dummy sync flag']
  #allocation17 [shape = 's32[]', space=sflag, size = 0x4, offset = 0, fixed_abs, tag = 'sflag constant byte address 0x0 - dummy sync flag']
  %s0 = inlined_call_operand.hbm [shape: bf16[256,128], index: 0, kind: input, shape index: {}]
  %s1 = inlined_call_operand.hbm [shape: bf16[128,128], index: 1, kind: input, shape index: {}]
  %s2 = inlined_call_operand.hbm [shape: bf16[128,128], index: 2, kind: input, shape index: {}]
  %s3 = inlined_call_operand.hbm [shape: bf16[128,128], index: 3, kind: input, shape index: {}]
  %s4 = inlined_call_operand.vmem [shape: f32[1,128], index: 4, kind: input, shape index: {}]
  %s5 = inlined_call_operand.hbm [shape: f32[256,128], index: 5, kind: output, shape index: {}]
  %s6 = sld [smem:[#allocation0]]
  $region61: #{tpu_custom_call.1} parent=0
    _
  %s8 = ssub.s32 1, %s6
  %s9 = scalar_select 0, %s8, %s6
  $region1: #{tpu_custom_call.1} parent=0
    #allocation6 [shape = 'u8[65536]{0}', space=vmem, size = 0x10000, scoped, tag = 'input window, operand 0']
    #allocation7 [shape = 's32[2]{0}', space=sflag, size = 0x8, scoped, tag = 'scoped memory for tpu_custom_call.1']
    #allocation8 [shape = 's32[2]{0}', space=sflag, size = 0x8, scoped, tag = 'scoped memory for tpu_custom_call.1']
    #allocation9 [shape = 'u8[131072]{0}', space=vmem, size = 0x20000, scoped, tag = 'output window, operand 0']
    %10 = vsyncpa [#allocation7], 0
    %s11 = scalar_lea.sflag [#allocation7], 1
    %12 = vsyncpa %s11, 0
    %13 = vsyncpa [#allocation8], 0
    %s14 = scalar_lea.sflag [#allocation8], 1
    %15 = vsyncpa %s14, 0
    loop: start=0, step=1, limit=4
    $region2: #{tpu_custom_call.1} parent=1 // loop_pre_header
      _
    $region3: #{tpu_custom_call.1} parent=1 // loop_header
      %s17 = sphi 0, %s21
      %p18 = scmp.ge.s32.totalorder %s17, 4
      %s24 = sphi 0, %s36
      %s25 = sphi 0, %s32
      %s26 = sphi 0, %s24
      %s27 = sphi 0, %s25
      %s28 = sphi 0, %s26
      %s29 = sphi 0, %s27
      %s43 = sphi 0, %s45
      %s46 = sphi 0, %s43
      %s47 = sphi 0, %s46
      %s63 = sphi 0, %s47
      %s67 = sphi 0, %s67
      %s69 = sphi 0, %s67
      %s70 = sphi 0, %s69
      %s84 = sphi 0, %s70
      %s94 = sphi 0, %s96
      %s97 = sphi 0, %s94
      %s98 = sphi 0, %s97
      %s114 = sphi 0, %s98
    $region4: #{tpu_custom_call.1} parent=1 // loop_header_branch
      %20 = sbr.rel (%p18) target = $region8
    $region5: #{tpu_custom_call.1} parent=1 // loop_body
      %s22 = ssub.s32 %s17, 1
      %s23 = ssub.s32 %s17, 2
      %s30 = sadd.s32 1, %s25
      %p31 = scmp.ge.s32.totalorder %s30, 2
      %s32 = scalar_select %p31, 0, %s30
      %s33 = sadd.s32 1, %s24
      %s34 = scalar_select %p31, %s33, %s24
      %p35 = scmp.ge.s32.totalorder %s34, 1
      %s36 = scalar_select %p35, 0, %s34
      %s37 = smul.u32 %s24, 2
      %s38 = sadd.s32 %s37, %s25
      %s39 = smul.u32 %s36, 2
      %s40 = sadd.s32 %s39, %s32
      %s41 = ssub.s32 %s38, %s40
      %p42 = scmp.eq.s32.totalorder %s41, 0
      %s44 = sadd.s32 %s43, 1
      %s45 = scalar_select %p42, %s43, %s44
      %p48 = pneg %p42
      %p49 = scmp.eq.s32.totalorder %s17, 1
      %p50 = por %p48, %p49
      %p51 = scmp.ne.s32.totalorder %s43, %s46
      %p52 = scmp.eq.s32.totalorder %s17, 0
      %p53 = por %p51, %p52
      %p54 = scmp.ne.s32.totalorder %s43, %s46
      %p55 = scmp.eq.s32.totalorder %s22, 1
      %p56 = por %p54, %p55
      %p57 = scmp.ne.s32.totalorder %s46, %s47
      %p58 = scmp.eq.s32.totalorder %s22, 0
      %p59 = por %p57, %p58
      %p60 = scmp.ne.s32.totalorder %s46, %s47
      %p61 = scmp.eq.s32.totalorder %s23, 1
      %p62 = por %p60, %p61
      %p64 = scmp.ne.s32.totalorder %s47, %s63
      %p65 = scmp.eq.s32.totalorder %s23, 0
      %p66 = por %p64, %p65
      %s68 = sadd.s32 %s67, 1
      %p71 = scmp.eq.s32.totalorder %s17, 1
      %p72 = scmp.ne.s32.totalorder %s67, %s69
      %p73 = scmp.eq.s32.totalorder %s17, 0
      %p74 = por %p72, %p73
      %p75 = scmp.ne.s32.totalorder %s67, %s69
      %p76 = scmp.eq.s32.totalorder %s22, 1
      %p77 = por %p75, %p76
      %p78 = scmp.ne.s32.totalorder %s69, %s70
      %p79 = scmp.eq.s32.totalorder %s22, 0
      %p80 = por %p78, %p79
      %p81 = scmp.ne.s32.totalorder %s69, %s70
      %p82 = scmp.eq.s32.totalorder %s23, 1
      %p83 = por %p81, %p82
      %p85 = scmp.ne.s32.totalorder %s70, %s84
      %p86 = scmp.eq.s32.totalorder %s23, 0
      %p87 = por %p85, %p86
      %s88 = smul.u32 %s24, 2
      %s89 = sadd.s32 %s88, %s25
      %s90 = smul.u32 %s36, 2
      %s91 = sadd.s32 %s90, %s32
      %s92 = ssub.s32 %s89, %s91
      %p93 = scmp.eq.s32.totalorder %s92, 0
      %s95 = sadd.s32 %s94, 1
      %s96 = scalar_select %p93, %s94, %s95
      %p99 = pneg %p93
      %p100 = scmp.eq.s32.totalorder %s17, 1
      %p101 = por %p99, %p100
      %p102 = scmp.ne.s32.totalorder %s94, %s97
      %p103 = scmp.eq.s32.totalorder %s17, 0
      %p104 = por %p102, %p103
      %p105 = scmp.ne.s32.totalorder %s94, %s97
      %p106 = scmp.eq.s32.totalorder %s22, 1
      %p107 = por %p105, %p106
      %p108 = scmp.ne.s32.totalorder %s97, %s98
      %p109 = scmp.eq.s32.totalorder %s22, 0
      %p110 = por %p108, %p109
      %p111 = scmp.ne.s32.totalorder %s97, %s98
      %p112 = scmp.eq.s32.totalorder %s23, 1
      %p113 = por %p111, %p112
      %p115 = scmp.ne.s32.totalorder %s98, %s114
      %p116 = scmp.eq.s32.totalorder %s23, 0
      %p117 = por %p115, %p116
      %p118 = scmp.le.s32.totalorder 1, %s17
      %p119 = scmp.lt.s32.totalorder %s17, 3
      %p120 = pnand %p118, %p119
      %p121 = pneg %p120
      // Predicated region
      $region9: #{tpu_custom_call.1} parent=5 // pred_check
        _
      $region10: #{tpu_custom_call.1} parent=5 // pred_check_branch
        %123 = sbr.rel (%p120) target = $region12
      $region11: #{tpu_custom_call.1} parent=5 // pred_region
        %s124 = ssub.s32 %s17, 1
        // Predicated region
        $region13: #{tpu_custom_call.1} parent=11 // pred_check
          %p125 = pneg %p80
        $region14: #{tpu_custom_call.1} parent=11 // pred_check_branch
          %127 = sbr.rel (%p125) target = $region16
        $region15: #{tpu_custom_call.1} parent=11 // pred_region
          _
        $region16: #{tpu_custom_call.1} parent=11 // pred_fallthru
          _
      $region12: #{tpu_custom_call.1} parent=5 // pred_fallthru
        _
      %p128 = scmp.lt.s32.totalorder %s17, 2
      // Predicated region
      $region17: #{tpu_custom_call.1} parent=5 // pred_check
        %p129 = pneg %p128
      $region18: #{tpu_custom_call.1} parent=5 // pred_check_branch
        %131 = sbr.rel (%p129) target = $region20
      $region19: #{tpu_custom_call.1} parent=5 // pred_region
        // Predicated region
        $region21: #{tpu_custom_call.1} parent=19 // pred_check
          %p132 = pneg %p53
        $region22: #{tpu_custom_call.1} parent=19 // pred_check_branch
          %134 = sbr.rel (%p132) target = $region24
        $region23: #{tpu_custom_call.1} parent=19 // pred_region
          %s135 = sand.u32 %s43, 1
          %s136 = scalar_lea.sflag [#allocation7], %s135
          %s137 = sand.u32 %s43, 1
          %s138 = smul.addr %s137, 64
          %s139 = scalar_lea.vmem [#allocation6], %s138
          %s140 = smul.u32 %s24, 2
          %s141 = sadd.s32 %s140, %s25
          %s142 = smul.u32 16, %s141
          %144 = vsyncadd %s136, 0
          %s145 = smul.addr %s142, 4
          %s146 = scalar_lea.hbm %s0, %s145
          %s147 = sshll.u32 %s146, 4
          %s148 = int_to_ptr.hbm [resolvable:$true] %s147
          %s149 = sshll.u32 %s139, 4
          %s150 = int_to_ptr.vmem [resolvable:$true] %s149
          %155 = dma.hbm_to_vmem [thread:$0]  %s148, 1024, %s150, %s136, 64, 64, 4
        $region24: #{tpu_custom_call.1} parent=19 // pred_fallthru
          _
      $region20: #{tpu_custom_call.1} parent=5 // pred_fallthru
        _
      %p156 = scmp.le.s32.totalorder 1, %s17
      %p157 = scmp.lt.s32.totalorder %s17, 3
      %p158 = pnand %p156, %p157
      %p159 = pneg %p158
      // Predicated region
      $region25: #{tpu_custom_call.1} parent=5 // pred_check
        _
      $region26: #{tpu_custom_call.1} parent=5 // pred_check_branch
        %161 = sbr.rel (%p158) target = $region28
      $region27: #{tpu_custom_call.1} parent=5 // pred_region
        %s162 = ssub.s32 %s17, 1
        %s163 = sand.u32 %s46, 1
        %s164 = scalar_lea.sflag [#allocation7], %s163
        %s165 = sand.u32 %s46, 1
        %s166 = smul.addr %s165, 64
        %s167 = scalar_lea.vmem [#allocation6], %s166
        // Predicated region
        $region29: #{tpu_custom_call.1} parent=27 // pred_check
          %p168 = pneg %p59
        $region30: #{tpu_custom_call.1} parent=27 // pred_check_branch
          %170 = sbr.rel (%p168) target = $region32
        $region31: #{tpu_custom_call.1} parent=27 // pred_region
          %172 = dma.done %s164, 1024
        $region32: #{tpu_custom_call.1} parent=27 // pred_fallthru
          _
        %s173 = sand.u32 %s46, 1
        %s174 = scalar_lea.sflag [#allocation7], %s173
        %s175 = sand.u32 %s46, 1
        %s176 = smul.addr %s175, 64
        %s177 = scalar_lea.vmem [#allocation6], %s176
        %p178 = pneg %p59
        %p179 = pneg %p56
        %p180 = pneg %p80
        %p181 = pneg %p77
        %p182 = pneg %p110
        %p183 = pneg %p107
        %s184 = sand.u32 %s97, 1
        %s185 = scalar_lea.sflag [#allocation8], %s184
        %s186 = sand.u32 %s97, 1
        %s187 = smul.addr %s186, 128
        %s188 = scalar_lea.vmem [#allocation9], %s187
        %s189 = smul.u32 %s26, 2
        %s190 = sadd.s32 %s189, %s27
        %s191 = smul.u32 16, %s190
        %s192 = smul.u32 %s26, 2
        %s193 = sadd.s32 %s192, %s27
        %s194 = smul.u32 16, %s193
        %p195 = scmp.eq.s32.totalorder %s27, 0
        // Predicated region
        $region33: #{tpu_custom_call.1} parent=27 // pred_check
          %p196 = pneg %p195
        $region34: #{tpu_custom_call.1} parent=27 // pred_check_branch
          %198 = sbr.rel (%p196) target = $region36
        $region35: #{tpu_custom_call.1} parent=27 // pred_region
          // Predicated region
          $region37: #{tpu_custom_call.1} parent=35 // pred_check
            _
          $region38: #{tpu_custom_call.1} parent=35 // pred_check_branch
            %200 = sbr.rel target = $region40
          $region39: #{tpu_custom_call.1} parent=35 // pred_region
            %201 = sst [smem:[#allocation12]] [#allocation11]
            %202 = sst [smem:[#allocation13]] [#allocation10]
          $region40: #{tpu_custom_call.1} parent=35 // pred_fallthru
            _
          %204 = shalt.err (0)
          %s206 = sshll.u32 %s1, 4
          %s207 = int_to_ptr.hbm [resolvable:$true] %s206
          %s208 = sshll.u32 [#allocation2], 4
          %s209 = int_to_ptr.vmem [resolvable:$true] %s208
          %211 = dma.hbm_to_vmem [thread:$0]  %s207, 1024, %s209, [#allocation5]
          %s212 = scalar_lea.sflag [#allocation5], 1
          // Predicated region
          $region41: #{tpu_custom_call.1} parent=35 // pred_check
            _
          $region42: #{tpu_custom_call.1} parent=35 // pred_check_branch
            %214 = sbr.rel target = $region44
          $region43: #{tpu_custom_call.1} parent=35 // pred_region
            %215 = sst [smem:[#allocation12]] [#allocation15]
            %216 = sst [smem:[#allocation13]] [#allocation14]
          $region44: #{tpu_custom_call.1} parent=35 // pred_fallthru
            _
          %218 = shalt.err (0)
          %s220 = sshll.u32 %s2, 4
          %s221 = int_to_ptr.hbm [resolvable:$true] %s220
          %s222 = sshll.u32 [#allocation3], 4
          %s223 = int_to_ptr.vmem [resolvable:$true] %s222
          %225 = dma.hbm_to_vmem [thread:$0]  %s221, 1024, %s223, %s212
          %s226 = scalar_lea.sflag [#allocation5], 2
          // Predicated region
          $region45: #{tpu_custom_call.1} parent=35 // pred_check
            _
          $region46: #{tpu_custom_call.1} parent=35 // pred_check_branch
            %228 = sbr.rel target = $region48
          $region47: #{tpu_custom_call.1} parent=35 // pred_region
            %229 = sst [smem:[#allocation12]] [#allocation17]
            %230 = sst [smem:[#allocation13]] [#allocation16]
          $region48: #{tpu_custom_call.1} parent=35 // pred_fallthru
            _
          %232 = shalt.err (0)
          %s234 = sshll.u32 %s3, 4
          %s235 = int_to_ptr.hbm [resolvable:$true] %s234
          %s236 = sshll.u32 [#allocation4], 4
          %s237 = int_to_ptr.vmem [resolvable:$true] %s236
          %239 = dma.hbm_to_vmem [thread:$0]  %s235, 1024, %s237, %s226
          %s240 = smul.u32 4, 16
          %s241 = smul.u32 %s240, 1
          %s242 = sshll.u32 %s241, 4
          %243 = dma.done [#allocation5], %s242
          %s244 = sshll.u32 %s241, 4
          %245 = dma.done %s212, %s244
          %s246 = sshll.u32 %s241, 4
          %247 = dma.done %s226, %s246
        $region36: #{tpu_custom_call.1} parent=27 // pred_fallthru
          _
        %v248 = vld [vmem:[%s167] sm:$0xf]
        %v249 = vld [vmem:[%s167 + $0x4] sm:$0xf]
        %v250 = vld [vmem:[%s167 + $0x8] sm:$0xf]
        %v251 = vld [vmem:[%s167 + $0xc] sm:$0xf]
        %v252 = vld [vmem:[%s167 + $0x10] sm:$0xf]
        %v253 = vld [vmem:[%s167 + $0x14] sm:$0xf]
        %v254 = vld [vmem:[%s167 + $0x18] sm:$0xf]
        %v255 = vld [vmem:[%s167 + $0x1c] sm:$0xf]
        %v256 = vld [vmem:[%s167 + $0x20] sm:$0xf]
        %v257 = vld [vmem:[%s167 + $0x24] sm:$0xf]
        %v258 = vld [vmem:[%s167 + $0x28] sm:$0xf]
        %v259 = vld [vmem:[%s167 + $0x2c] sm:$0xf]
        %v260 = vld [vmem:[%s167 + $0x30] sm:$0xf]
        %v261 = vld [vmem:[%s167 + $0x34] sm:$0xf]
        %v262 = vld [vmem:[%s167 + $0x38] sm:$0xf]
        %v263 = vld [vmem:[%s167 + $0x3c] sm:$0xf]
        %v264 = vld [vmem:[#allocation2] sm:$0xf]
        %v265 = vld [vmem:[#allocation2 + $0x4] sm:$0xf]
        %v266 = vld [vmem:[#allocation2 + $0x8] sm:$0xf]
        %v267 = vld [vmem:[#allocation2 + $0xc] sm:$0xf]
        %v268 = vld [vmem:[#allocation2 + $0x10] sm:$0xf]
        %v269 = vld [vmem:[#allocation2 + $0x14] sm:$0xf]
        %v270 = vld [vmem:[#allocation2 + $0x18] sm:$0xf]
        %v271 = vld [vmem:[#allocation2 + $0x1c] sm:$0xf]
        %v272 = vld [vmem:[#allocation2 + $0x20] sm:$0xf]
        %v273 = vld [vmem:[#allocation2 + $0x24] sm:$0xf]
        %v274 = vld [vmem:[#allocation2 + $0x28] sm:$0xf]
        %v275 = vld [vmem:[#allocation2 + $0x2c] sm:$0xf]
        %v276 = vld [vmem:[#allocation2 + $0x30] sm:$0xf]
        %v277 = vld [vmem:[#allocation2 + $0x34] sm:$0xf]
        %v278 = vld [vmem:[#allocation2 + $0x38] sm:$0xf]
        %v279 = vld [vmem:[#allocation2 + $0x3c] sm:$0xf]
        %v296 = vunpack.c.l.b16 %v248
        %v297 = vunpack.c.l.b16 %v249
        %v298 = vunpack.c.l.b16 %v250
        %v299 = vunpack.c.l.b16 %v251
        %v300 = vunpack.c.l.b16 %v252
        %v301 = vunpack.c.l.b16 %v253
        %v302 = vunpack.c.l.b16 %v254
        %v303 = vunpack.c.l.b16 %v255
        %v304 = vunpack.c.l.b16 %v256
        %v305 = vunpack.c.l.b16 %v257
        %v306 = vunpack.c.l.b16 %v258
        %v307 = vunpack.c.l.b16 %v259
        %v308 = vunpack.c.l.b16 %v260
        %v309 = vunpack.c.l.b16 %v261
        %v310 = vunpack.c.l.b16 %v262
        %v311 = vunpack.c.l.b16 %v263
        %v312 = vpack.c.b16 %v297, %v296
        %v313 = vpack.c.b16 %v299, %v298
        %v314 = vpack.c.b16 %v301, %v300
        %v315 = vpack.c.b16 %v303, %v302
        %v316 = vpack.c.b16 %v305, %v304
        %v317 = vpack.c.b16 %v307, %v306
        %v318 = vpack.c.b16 %v309, %v308
        %v319 = vpack.c.b16 %v311, %v310
        %v344 = vunpack.c.l.b16 %v264
        %v345 = vunpack.c.l.b16 %v265
        %v346 = vunpack.c.l.b16 %v266
        %v347 = vunpack.c.l.b16 %v267
        %v348 = vunpack.c.l.b16 %v268
        %v349 = vunpack.c.l.b16 %v269
        %v350 = vunpack.c.l.b16 %v270
        %v351 = vunpack.c.l.b16 %v271
        %v352 = vunpack.c.l.b16 %v272
        %v353 = vunpack.c.l.b16 %v273
        %v354 = vunpack.c.l.b16 %v274
        %v355 = vunpack.c.l.b16 %v275
        %v356 = vunpack.c.l.b16 %v276
        %v357 = vunpack.c.l.b16 %v277
        %v358 = vunpack.c.l.b16 %v278
        %v359 = vunpack.c.l.b16 %v279
        %v360 = vpack.c.b16 %v345, %v344
        %v361 = vpack.c.b16 %v347, %v346
        %v362 = vpack.c.b16 %v349, %v348
        %v363 = vpack.c.b16 %v351, %v350
        %v364 = vpack.c.b16 %v353, %v352
        %v365 = vpack.c.b16 %v355, %v354
        %v366 = vpack.c.b16 %v357, %v356
        %v367 = vpack.c.b16 %v359, %v358
        %376 = vmatpush.bf16.msra.mxu0 %v367
        %377 = vmatpush.bf16.msra.mxu0 %v366
        %378 = vmatpush.bf16.msra.mxu0 %v365
        %379 = vmatpush.bf16.msra.mxu0 %v364
        %380 = vmatpush.bf16.msra.mxu0 %v363
        %381 = vmatpush.bf16.msra.mxu0 %v362
        %382 = vmatpush.bf16.msra.mxu0 %v361
        %383 = vmatpush.bf16.msra.mxu0 %v360
        %384 = vmatmul.bf16.gmra.mxu0 %v312
        %v385 = vpop.f32.mrf.mxu0
        %v386 = vadd.f32 0.0, %v385
        %v387 = vpop.f32.mrf.mxu0
        %v388 = vadd.f32 0.0, %v387
        %389 = vmatmul.bf16.gmra.mxu0 %v313
        %v390 = vpop.f32.mrf.mxu0
        %v391 = vadd.f32 0.0, %v390
        %v392 = vpop.f32.mrf.mxu0
        %v393 = vadd.f32 0.0, %v392
        %394 = vmatmul.bf16.gmra.mxu0 %v314
        %v395 = vpop.f32.mrf.mxu0
        %v396 = vadd.f32 0.0, %v395
        %v397 = vpop.f32.mrf.mxu0
        %v398 = vadd.f32 0.0, %v397
        %399 = vmatmul.bf16.gmra.mxu0 %v315
        %v400 = vpop.f32.mrf.mxu0
        %v401 = vadd.f32 0.0, %v400
        %v402 = vpop.f32.mrf.mxu0
        %v403 = vadd.f32 0.0, %v402
        %404 = vmatmul.bf16.gmra.mxu0 %v316
        %v405 = vpop.f32.mrf.mxu0
        %v406 = vadd.f32 0.0, %v405
        %v407 = vpop.f32.mrf.mxu0
        %v408 = vadd.f32 0.0, %v407
        %409 = vmatmul.bf16.gmra.mxu0 %v317
        %v410 = vpop.f32.mrf.mxu0
        %v411 = vadd.f32 0.0, %v410
        %v412 = vpop.f32.mrf.mxu0
        %v413 = vadd.f32 0.0, %v412
        %414 = vmatmul.bf16.gmra.mxu0 %v318
        %v415 = vpop.f32.mrf.mxu0
        %v416 = vadd.f32 0.0, %v415
        %v417 = vpop.f32.mrf.mxu0
        %v418 = vadd.f32 0.0, %v417
        %419 = vmatmul.bf16.gmra.mxu0 %v319
        %v420 = vpop.f32.mrf.mxu0
        %v421 = vadd.f32 0.0, %v420
        %v422 = vpop.f32.mrf.mxu0
        %v423 = vadd.f32 0.0, %v422
        %424 = vdwg.mxu0
        %v425 = vxor.u32 %v386, 2147483648
        %v426 = vxor.u32 %v388, 2147483648
        %v427 = vxor.u32 %v391, 2147483648
        %v428 = vxor.u32 %v393, 2147483648
        %v429 = vxor.u32 %v396, 2147483648
        %v430 = vxor.u32 %v398, 2147483648
        %v431 = vxor.u32 %v401, 2147483648
        %v432 = vxor.u32 %v403, 2147483648
        %v433 = vxor.u32 %v406, 2147483648
        %v434 = vxor.u32 %v408, 2147483648
        %v435 = vxor.u32 %v411, 2147483648
        %v436 = vxor.u32 %v413, 2147483648
        %v437 = vxor.u32 %v416, 2147483648
        %v438 = vxor.u32 %v418, 2147483648
        %v439 = vxor.u32 %v421, 2147483648
        %v440 = vxor.u32 %v423, 2147483648
        %v441 = vmul.f32 %v425, 1.442695
        %v442 = vpow.pop %v441
        %v443 = vmul.f32 %v426, 1.442695
        %v444 = vpow.pop %v443
        %v445 = vmul.f32 %v427, 1.442695
        %v446 = vpow.pop %v445
        %v447 = vmul.f32 %v428, 1.442695
        %v448 = vpow.pop %v447
        %v449 = vmul.f32 %v429, 1.442695
        %v450 = vpow.pop %v449
        %v451 = vmul.f32 %v430, 1.442695
        %v452 = vpow.pop %v451
        %v453 = vmul.f32 %v431, 1.442695
        %v454 = vpow.pop %v453
        %v455 = vmul.f32 %v432, 1.442695
        %v456 = vpow.pop %v455
        %v457 = vmul.f32 %v433, 1.442695
        %v458 = vpow.pop %v457
        %v459 = vmul.f32 %v434, 1.442695
        %v460 = vpow.pop %v459
        %v461 = vmul.f32 %v435, 1.442695
        %v462 = vpow.pop %v461
        %v463 = vmul.f32 %v436, 1.442695
        %v464 = vpow.pop %v463
        %v465 = vmul.f32 %v437, 1.442695
        %v466 = vpow.pop %v465
        %v467 = vmul.f32 %v438, 1.442695
        %v468 = vpow.pop %v467
        %v469 = vmul.f32 %v439, 1.442695
        %v470 = vpow.pop %v469
        %v471 = vmul.f32 %v440, 1.442695
        %v472 = vpow.pop %v471
        %v473 = vadd.f32 %v442, 1.0
        %v474 = vadd.f32 %v444, 1.0
        %v475 = vadd.f32 %v446, 1.0
        %v476 = vadd.f32 %v448, 1.0
        %v477 = vadd.f32 %v450, 1.0
        %v478 = vadd.f32 %v452, 1.0
        %v479 = vadd.f32 %v454, 1.0
        %v480 = vadd.f32 %v456, 1.0
        %v481 = vadd.f32 %v458, 1.0
        %v482 = vadd.f32 %v460, 1.0
        %v483 = vadd.f32 %v462, 1.0
        %v484 = vadd.f32 %v464, 1.0
        %v485 = vadd.f32 %v466, 1.0
        %v486 = vadd.f32 %v468, 1.0
        %v487 = vadd.f32 %v470, 1.0
        %v488 = vadd.f32 %v472, 1.0
        %v489 = vrcp.pop %v473
        %v490 = vmul.f32 %v473, %v489
        %v491 = vsub.f32 1.0, %v490
        %v492 = vmul.f32 %v489, %v491
        %v493 = vadd.f32 %v489, %v492
        %vm494 = vweird.f32 %v473
        %vm495 = vweird.f32 %v489
        %vm496 = vmor %vm494, %vm495
        %v497 = vsel %vm496, %v489, %v493
        %v498 = vand.u32 2147483647, %v473
        %vm499 = vcmp.eq.f32.partialorder %v498, 8.507059e+37
        %v500 = vand.u32 %v473, 2147483648
        %v501 = vor.u32 1.1754944e-38, %v500
        %v502 = vsel %vm499, %v501, %v497
        %v503 = vmul.f32 1.0, %v502
        %v504 = vrcp.pop %v474
        %v505 = vmul.f32 %v474, %v504
        %v506 = vsub.f32 1.0, %v505
        %v507 = vmul.f32 %v504, %v506
        %v508 = vadd.f32 %v504, %v507
        %vm509 = vweird.f32 %v474
        %vm510 = vweird.f32 %v504
        %vm511 = vmor %vm509, %vm510
        %v512 = vsel %vm511, %v504, %v508
        %v513 = vand.u32 2147483647, %v474
        %vm514 = vcmp.eq.f32.partialorder %v513, 8.507059e+37
        %v515 = vand.u32 %v474, 2147483648
        %v516 = vor.u32 1.1754944e-38, %v515
        %v517 = vsel %vm514, %v516, %v512
        %v518 = vmul.f32 1.0, %v517
        %v519 = vrcp.pop %v475
        %v520 = vmul.f32 %v475, %v519
        %v521 = vsub.f32 1.0, %v520
        %v522 = vmul.f32 %v519, %v521
        %v523 = vadd.f32 %v519, %v522
        %vm524 = vweird.f32 %v475
        %vm525 = vweird.f32 %v519
        %vm526 = vmor %vm524, %vm525
        %v527 = vsel %vm526, %v519, %v523
        %v528 = vand.u32 2147483647, %v475
        %vm529 = vcmp.eq.f32.partialorder %v528, 8.507059e+37
        %v530 = vand.u32 %v475, 2147483648
        %v531 = vor.u32 1.1754944e-38, %v530
        %v532 = vsel %vm529, %v531, %v527
        %v533 = vmul.f32 1.0, %v532
        %v534 = vrcp.pop %v476
        %v535 = vmul.f32 %v476, %v534
        %v536 = vsub.f32 1.0, %v535
        %v537 = vmul.f32 %v534, %v536
        %v538 = vadd.f32 %v534, %v537
        %vm539 = vweird.f32 %v476
        %vm540 = vweird.f32 %v534
        %vm541 = vmor %vm539, %vm540
        %v542 = vsel %vm541, %v534, %v538
        %v543 = vand.u32 2147483647, %v476
        %vm544 = vcmp.eq.f32.partialorder %v543, 8.507059e+37
        %v545 = vand.u32 %v476, 2147483648
        %v546 = vor.u32 1.1754944e-38, %v545
        %v547 = vsel %vm544, %v546, %v542
        %v548 = vmul.f32 1.0, %v547
        %v549 = vrcp.pop %v477
        %v550 = vmul.f32 %v477, %v549
        %v551 = vsub.f32 1.0, %v550
        %v552 = vmul.f32 %v549, %v551
        %v553 = vadd.f32 %v549, %v552
        %vm554 = vweird.f32 %v477
        %vm555 = vweird.f32 %v549
        %vm556 = vmor %vm554, %vm555
        %v557 = vsel %vm556, %v549, %v553
        %v558 = vand.u32 2147483647, %v477
        %vm559 = vcmp.eq.f32.partialorder %v558, 8.507059e+37
        %v560 = vand.u32 %v477, 2147483648
        %v561 = vor.u32 1.1754944e-38, %v560
        %v562 = vsel %vm559, %v561, %v557
        %v563 = vmul.f32 1.0, %v562
        %v564 = vrcp.pop %v478
        %v565 = vmul.f32 %v478, %v564
        %v566 = vsub.f32 1.0, %v565
        %v567 = vmul.f32 %v564, %v566
        %v568 = vadd.f32 %v564, %v567
        %vm569 = vweird.f32 %v478
        %vm570 = vweird.f32 %v564
        %vm571 = vmor %vm569, %vm570
        %v572 = vsel %vm571, %v564, %v568
        %v573 = vand.u32 2147483647, %v478
        %vm574 = vcmp.eq.f32.partialorder %v573, 8.507059e+37
        %v575 = vand.u32 %v478, 2147483648
        %v576 = vor.u32 1.1754944e-38, %v575
        %v577 = vsel %vm574, %v576, %v572
        %v578 = vmul.f32 1.0, %v577
        %v579 = vrcp.pop %v479
        %v580 = vmul.f32 %v479, %v579
        %v581 = vsub.f32 1.0, %v580
        %v582 = vmul.f32 %v579, %v581
        %v583 = vadd.f32 %v579, %v582
        %vm584 = vweird.f32 %v479
        %vm585 = vweird.f32 %v579
        %vm586 = vmor %vm584, %vm585
        %v587 = vsel %vm586, %v579, %v583
        %v588 = vand.u32 2147483647, %v479
        %vm589 = vcmp.eq.f32.partialorder %v588, 8.507059e+37
        %v590 = vand.u32 %v479, 2147483648
        %v591 = vor.u32 1.1754944e-38, %v590
        %v592 = vsel %vm589, %v591, %v587
        %v593 = vmul.f32 1.0, %v592
        %v594 = vrcp.pop %v480
        %v595 = vmul.f32 %v480, %v594
        %v596 = vsub.f32 1.0, %v595
        %v597 = vmul.f32 %v594, %v596
        %v598 = vadd.f32 %v594, %v597
        %vm599 = vweird.f32 %v480
        %vm600 = vweird.f32 %v594
        %vm601 = vmor %vm599, %vm600
        %v602 = vsel %vm601, %v594, %v598
        %v603 = vand.u32 2147483647, %v480
        %vm604 = vcmp.eq.f32.partialorder %v603, 8.507059e+37
        %v605 = vand.u32 %v480, 2147483648
        %v606 = vor.u32 1.1754944e-38, %v605
        %v607 = vsel %vm604, %v606, %v602
        %v608 = vmul.f32 1.0, %v607
        %v609 = vrcp.pop %v481
        %v610 = vmul.f32 %v481, %v609
        %v611 = vsub.f32 1.0, %v610
        %v612 = vmul.f32 %v609, %v611
        %v613 = vadd.f32 %v609, %v612
        %vm614 = vweird.f32 %v481
        %vm615 = vweird.f32 %v609
        %vm616 = vmor %vm614, %vm615
        %v617 = vsel %vm616, %v609, %v613
        %v618 = vand.u32 2147483647, %v481
        %vm619 = vcmp.eq.f32.partialorder %v618, 8.507059e+37
        %v620 = vand.u32 %v481, 2147483648
        %v621 = vor.u32 1.1754944e-38, %v620
        %v622 = vsel %vm619, %v621, %v617
        %v623 = vmul.f32 1.0, %v622
        %v624 = vrcp.pop %v482
        %v625 = vmul.f32 %v482, %v624
        %v626 = vsub.f32 1.0, %v625
        %v627 = vmul.f32 %v624, %v626
        %v628 = vadd.f32 %v624, %v627
        %vm629 = vweird.f32 %v482
        %vm630 = vweird.f32 %v624
        %vm631 = vmor %vm629, %vm630
        %v632 = vsel %vm631, %v624, %v628
        %v633 = vand.u32 2147483647, %v482
        %vm634 = vcmp.eq.f32.partialorder %v633, 8.507059e+37
        %v635 = vand.u32 %v482, 2147483648
        %v636 = vor.u32 1.1754944e-38, %v635
        %v637 = vsel %vm634, %v636, %v632
        %v638 = vmul.f32 1.0, %v637
        %v639 = vrcp.pop %v483
        %v640 = vmul.f32 %v483, %v639
        %v641 = vsub.f32 1.0, %v640
        %v642 = vmul.f32 %v639, %v641
        %v643 = vadd.f32 %v639, %v642
        %vm644 = vweird.f32 %v483
        %vm645 = vweird.f32 %v639
        %vm646 = vmor %vm644, %vm645
        %v647 = vsel %vm646, %v639, %v643
        %v648 = vand.u32 2147483647, %v483
        %vm649 = vcmp.eq.f32.partialorder %v648, 8.507059e+37
        %v650 = vand.u32 %v483, 2147483648
        %v651 = vor.u32 1.1754944e-38, %v650
        %v652 = vsel %vm649, %v651, %v647
        %v653 = vmul.f32 1.0, %v652
        %v654 = vrcp.pop %v484
        %v655 = vmul.f32 %v484, %v654
        %v656 = vsub.f32 1.0, %v655
        %v657 = vmul.f32 %v654, %v656
        %v658 = vadd.f32 %v654, %v657
        %vm659 = vweird.f32 %v484
        %vm660 = vweird.f32 %v654
        %vm661 = vmor %vm659, %vm660
        %v662 = vsel %vm661, %v654, %v658
        %v663 = vand.u32 2147483647, %v484
        %vm664 = vcmp.eq.f32.partialorder %v663, 8.507059e+37
        %v665 = vand.u32 %v484, 2147483648
        %v666 = vor.u32 1.1754944e-38, %v665
        %v667 = vsel %vm664, %v666, %v662
        %v668 = vmul.f32 1.0, %v667
        %v669 = vrcp.pop %v485
        %v670 = vmul.f32 %v485, %v669
        %v671 = vsub.f32 1.0, %v670
        %v672 = vmul.f32 %v669, %v671
        %v673 = vadd.f32 %v669, %v672
        %vm674 = vweird.f32 %v485
        %vm675 = vweird.f32 %v669
        %vm676 = vmor %vm674, %vm675
        %v677 = vsel %vm676, %v669, %v673
        %v678 = vand.u32 2147483647, %v485
        %vm679 = vcmp.eq.f32.partialorder %v678, 8.507059e+37
        %v680 = vand.u32 %v485, 2147483648
        %v681 = vor.u32 1.1754944e-38, %v680
        %v682 = vsel %vm679, %v681, %v677
        %v683 = vmul.f32 1.0, %v682
        %v684 = vrcp.pop %v486
        %v685 = vmul.f32 %v486, %v684
        %v686 = vsub.f32 1.0, %v685
        %v687 = vmul.f32 %v684, %v686
        %v688 = vadd.f32 %v684, %v687
        %vm689 = vweird.f32 %v486
        %vm690 = vweird.f32 %v684
        %vm691 = vmor %vm689, %vm690
        %v692 = vsel %vm691, %v684, %v688
        %v693 = vand.u32 2147483647, %v486
        %vm694 = vcmp.eq.f32.partialorder %v693, 8.507059e+37
        %v695 = vand.u32 %v486, 2147483648
        %v696 = vor.u32 1.1754944e-38, %v695
        %v697 = vsel %vm694, %v696, %v692
        %v698 = vmul.f32 1.0, %v697
        %v699 = vrcp.pop %v487
        %v700 = vmul.f32 %v487, %v699
        %v701 = vsub.f32 1.0, %v700
        %v702 = vmul.f32 %v699, %v701
        %v703 = vadd.f32 %v699, %v702
        %vm704 = vweird.f32 %v487
        %vm705 = vweird.f32 %v699
        %vm706 = vmor %vm704, %vm705
        %v707 = vsel %vm706, %v699, %v703
        %v708 = vand.u32 2147483647, %v487
        %vm709 = vcmp.eq.f32.partialorder %v708, 8.507059e+37
        %v710 = vand.u32 %v487, 2147483648
        %v711 = vor.u32 1.1754944e-38, %v710
        %v712 = vsel %vm709, %v711, %v707
        %v713 = vmul.f32 1.0, %v712
        %v714 = vrcp.pop %v488
        %v715 = vmul.f32 %v488, %v714
        %v716 = vsub.f32 1.0, %v715
        %v717 = vmul.f32 %v714, %v716
        %v718 = vadd.f32 %v714, %v717
        %vm719 = vweird.f32 %v488
        %vm720 = vweird.f32 %v714
        %vm721 = vmor %vm719, %vm720
        %v722 = vsel %vm721, %v714, %v718
        %v723 = vand.u32 2147483647, %v488
        %vm724 = vcmp.eq.f32.partialorder %v723, 8.507059e+37
        %v725 = vand.u32 %v488, 2147483648
        %v726 = vor.u32 1.1754944e-38, %v725
        %v727 = vsel %vm724, %v726, %v722
        %v728 = vmul.f32 1.0, %v727
        %v729 = vmul.f32 %v386, %v503
        %v730 = vmul.f32 %v388, %v518
        %v731 = vmul.f32 %v391, %v533
        %v732 = vmul.f32 %v393, %v548
        %v733 = vmul.f32 %v396, %v563
        %v734 = vmul.f32 %v398, %v578
        %v735 = vmul.f32 %v401, %v593
        %v736 = vmul.f32 %v403, %v608
        %v737 = vmul.f32 %v406, %v623
        %v738 = vmul.f32 %v408, %v638
        %v739 = vmul.f32 %v411, %v653
        %v740 = vmul.f32 %v413, %v668
        %v741 = vmul.f32 %v416, %v683
        %v742 = vmul.f32 %v418, %v698
        %v743 = vmul.f32 %v421, %v713
        %v744 = vmul.f32 %v423, %v728
        %v745 = vpack.c.bf16 %v730, %v729
        %v746 = vpack.c.bf16 %v732, %v731
        %v747 = vpack.c.bf16 %v734, %v733
        %v748 = vpack.c.bf16 %v736, %v735
        %v749 = vpack.c.bf16 %v738, %v737
        %v750 = vpack.c.bf16 %v740, %v739
        %v751 = vpack.c.bf16 %v742, %v741
        %v752 = vpack.c.bf16 %v744, %v743
        %v753 = vld [vmem:[#allocation3] sm:$0xf]
        %v754 = vld [vmem:[#allocation3 + $0x4] sm:$0xf]
        %v755 = vld [vmem:[#allocation3 + $0x8] sm:$0xf]
        %v756 = vld [vmem:[#allocation3 + $0xc] sm:$0xf]
        %v757 = vld [vmem:[#allocation3 + $0x10] sm:$0xf]
        %v758 = vld [vmem:[#allocation3 + $0x14] sm:$0xf]
        %v759 = vld [vmem:[#allocation3 + $0x18] sm:$0xf]
        %v760 = vld [vmem:[#allocation3 + $0x1c] sm:$0xf]
        %v761 = vld [vmem:[#allocation3 + $0x20] sm:$0xf]
        %v762 = vld [vmem:[#allocation3 + $0x24] sm:$0xf]
        %v763 = vld [vmem:[#allocation3 + $0x28] sm:$0xf]
        %v764 = vld [vmem:[#allocation3 + $0x2c] sm:$0xf]
        %v765 = vld [vmem:[#allocation3 + $0x30] sm:$0xf]
        %v766 = vld [vmem:[#allocation3 + $0x34] sm:$0xf]
        %v767 = vld [vmem:[#allocation3 + $0x38] sm:$0xf]
        %v768 = vld [vmem:[#allocation3 + $0x3c] sm:$0xf]
        %v785 = vunpack.c.l.b16 %v753
        %v786 = vunpack.c.l.b16 %v754
        %v787 = vunpack.c.l.b16 %v755
        %v788 = vunpack.c.l.b16 %v756
        %v789 = vunpack.c.l.b16 %v757
        %v790 = vunpack.c.l.b16 %v758
        %v791 = vunpack.c.l.b16 %v759
        %v792 = vunpack.c.l.b16 %v760
        %v793 = vunpack.c.l.b16 %v761
        %v794 = vunpack.c.l.b16 %v762
        %v795 = vunpack.c.l.b16 %v763
        %v796 = vunpack.c.l.b16 %v764
        %v797 = vunpack.c.l.b16 %v765
        %v798 = vunpack.c.l.b16 %v766
        %v799 = vunpack.c.l.b16 %v767
        %v800 = vunpack.c.l.b16 %v768
        %v801 = vpack.c.b16 %v786, %v785
        %v802 = vpack.c.b16 %v788, %v787
        %v803 = vpack.c.b16 %v790, %v789
        %v804 = vpack.c.b16 %v792, %v791
        %v805 = vpack.c.b16 %v794, %v793
        %v806 = vpack.c.b16 %v796, %v795
        %v807 = vpack.c.b16 %v798, %v797
        %v808 = vpack.c.b16 %v800, %v799
        %817 = vmatpush.bf16.msra.mxu0 %v808
        %818 = vmatpush.bf16.msra.mxu0 %v807
        %819 = vmatpush.bf16.msra.mxu0 %v806
        %820 = vmatpush.bf16.msra.mxu0 %v805
        %821 = vmatpush.bf16.msra.mxu0 %v804
        %822 = vmatpush.bf16.msra.mxu0 %v803
        %823 = vmatpush.bf16.msra.mxu0 %v802
        %824 = vmatpush.bf16.msra.mxu0 %v801
        %825 = vmatmul.bf16.gmra.mxu0 %v745
        %v826 = vpop.f32.mrf.mxu0
        %v827 = vadd.f32 0.0, %v826
        %v828 = vpop.f32.mrf.mxu0
        %v829 = vadd.f32 0.0, %v828
        %830 = vmatmul.bf16.gmra.mxu0 %v746
        %v831 = vpop.f32.mrf.mxu0
        %v832 = vadd.f32 0.0, %v831
        %v833 = vpop.f32.mrf.mxu0
        %v834 = vadd.f32 0.0, %v833
        %835 = vmatmul.bf16.gmra.mxu0 %v747
        %v836 = vpop.f32.mrf.mxu0
        %v837 = vadd.f32 0.0, %v836
        %v838 = vpop.f32.mrf.mxu0
        %v839 = vadd.f32 0.0, %v838
        %840 = vmatmul.bf16.gmra.mxu0 %v748
        %v841 = vpop.f32.mrf.mxu0
        %v842 = vadd.f32 0.0, %v841
        %v843 = vpop.f32.mrf.mxu0
        %v844 = vadd.f32 0.0, %v843
        %845 = vmatmul.bf16.gmra.mxu0 %v749
        %v846 = vpop.f32.mrf.mxu0
        %v847 = vadd.f32 0.0, %v846
        %v848 = vpop.f32.mrf.mxu0
        %v849 = vadd.f32 0.0, %v848
        %850 = vmatmul.bf16.gmra.mxu0 %v750
        %v851 = vpop.f32.mrf.mxu0
        %v852 = vadd.f32 0.0, %v851
        %v853 = vpop.f32.mrf.mxu0
        %v854 = vadd.f32 0.0, %v853
        %855 = vmatmul.bf16.gmra.mxu0 %v751
        %v856 = vpop.f32.mrf.mxu0
        %v857 = vadd.f32 0.0, %v856
        %v858 = vpop.f32.mrf.mxu0
        %v859 = vadd.f32 0.0, %v858
        %860 = vmatmul.bf16.gmra.mxu0 %v752
        %v861 = vpop.f32.mrf.mxu0
        %v862 = vadd.f32 0.0, %v861
        %v863 = vpop.f32.mrf.mxu0
        %v864 = vadd.f32 0.0, %v863
        %865 = vdwg.mxu0
        %v866 = vxor.u32 %v827, 2147483648
        %v867 = vxor.u32 %v829, 2147483648
        %v868 = vxor.u32 %v832, 2147483648
        %v869 = vxor.u32 %v834, 2147483648
        %v870 = vxor.u32 %v837, 2147483648
        %v871 = vxor.u32 %v839, 2147483648
        %v872 = vxor.u32 %v842, 2147483648
        %v873 = vxor.u32 %v844, 2147483648
        %v874 = vxor.u32 %v847, 2147483648
        %v875 = vxor.u32 %v849, 2147483648
        %v876 = vxor.u32 %v852, 2147483648
        %v877 = vxor.u32 %v854, 2147483648
        %v878 = vxor.u32 %v857, 2147483648
        %v879 = vxor.u32 %v859, 2147483648
        %v880 = vxor.u32 %v862, 2147483648
        %v881 = vxor.u32 %v864, 2147483648
        %v882 = vmul.f32 %v866, 1.442695
        %v883 = vpow.pop %v882
        %v884 = vmul.f32 %v867, 1.442695
        %v885 = vpow.pop %v884
        %v886 = vmul.f32 %v868, 1.442695
        %v887 = vpow.pop %v886
        %v888 = vmul.f32 %v869, 1.442695
        %v889 = vpow.pop %v888
        %v890 = vmul.f32 %v870, 1.442695
        %v891 = vpow.pop %v890
        %v892 = vmul.f32 %v871, 1.442695
        %v893 = vpow.pop %v892
        %v894 = vmul.f32 %v872, 1.442695
        %v895 = vpow.pop %v894
        %v896 = vmul.f32 %v873, 1.442695
        %v897 = vpow.pop %v896
        %v898 = vmul.f32 %v874, 1.442695
        %v899 = vpow.pop %v898
        %v900 = vmul.f32 %v875, 1.442695
        %v901 = vpow.pop %v900
        %v902 = vmul.f32 %v876, 1.442695
        %v903 = vpow.pop %v902
        %v904 = vmul.f32 %v877, 1.442695
        %v905 = vpow.pop %v904
        %v906 = vmul.f32 %v878, 1.442695
        %v907 = vpow.pop %v906
        %v908 = vmul.f32 %v879, 1.442695
        %v909 = vpow.pop %v908
        %v910 = vmul.f32 %v880, 1.442695
        %v911 = vpow.pop %v910
        %v912 = vmul.f32 %v881, 1.442695
        %v913 = vpow.pop %v912
        %v914 = vadd.f32 %v883, 1.0
        %v915 = vadd.f32 %v885, 1.0
        %v916 = vadd.f32 %v887, 1.0
        %v917 = vadd.f32 %v889, 1.0
        %v918 = vadd.f32 %v891, 1.0
        %v919 = vadd.f32 %v893, 1.0
        %v920 = vadd.f32 %v895, 1.0
        %v921 = vadd.f32 %v897, 1.0
        %v922 = vadd.f32 %v899, 1.0
        %v923 = vadd.f32 %v901, 1.0
        %v924 = vadd.f32 %v903, 1.0
        %v925 = vadd.f32 %v905, 1.0
        %v926 = vadd.f32 %v907, 1.0
        %v927 = vadd.f32 %v909, 1.0
        %v928 = vadd.f32 %v911, 1.0
        %v929 = vadd.f32 %v913, 1.0
        %v930 = vrcp.pop %v914
        %v931 = vmul.f32 %v914, %v930
        %v932 = vsub.f32 1.0, %v931
        %v933 = vmul.f32 %v930, %v932
        %v934 = vadd.f32 %v930, %v933
        %vm935 = vweird.f32 %v914
        %vm936 = vweird.f32 %v930
        %vm937 = vmor %vm935, %vm936
        %v938 = vsel %vm937, %v930, %v934
        %v939 = vand.u32 2147483647, %v914
        %vm940 = vcmp.eq.f32.partialorder %v939, 8.507059e+37
        %v941 = vand.u32 %v914, 2147483648
        %v942 = vor.u32 1.1754944e-38, %v941
        %v943 = vsel %vm940, %v942, %v938
        %v944 = vmul.f32 1.0, %v943
        %v945 = vrcp.pop %v915
        %v946 = vmul.f32 %v915, %v945
        %v947 = vsub.f32 1.0, %v946
        %v948 = vmul.f32 %v945, %v947
        %v949 = vadd.f32 %v945, %v948
        %vm950 = vweird.f32 %v915
        %vm951 = vweird.f32 %v945
        %vm952 = vmor %vm950, %vm951
        %v953 = vsel %vm952, %v945, %v949
        %v954 = vand.u32 2147483647, %v915
        %vm955 = vcmp.eq.f32.partialorder %v954, 8.507059e+37
        %v956 = vand.u32 %v915, 2147483648
        %v957 = vor.u32 1.1754944e-38, %v956
        %v958 = vsel %vm955, %v957, %v953
        %v959 = vmul.f32 1.0, %v958
        %v960 = vrcp.pop %v916
        %v961 = vmul.f32 %v916, %v960
        %v962 = vsub.f32 1.0, %v961
        %v963 = vmul.f32 %v960, %v962
        %v964 = vadd.f32 %v960, %v963
        %vm965 = vweird.f32 %v916
        %vm966 = vweird.f32 %v960
        %vm967 = vmor %vm965, %vm966
        %v968 = vsel %vm967, %v960, %v964
        %v969 = vand.u32 2147483647, %v916
        %vm970 = vcmp.eq.f32.partialorder %v969, 8.507059e+37
        %v971 = vand.u32 %v916, 2147483648
        %v972 = vor.u32 1.1754944e-38, %v971
        %v973 = vsel %vm970, %v972, %v968
        %v974 = vmul.f32 1.0, %v973
        %v975 = vrcp.pop %v917
        %v976 = vmul.f32 %v917, %v975
        %v977 = vsub.f32 1.0, %v976
        %v978 = vmul.f32 %v975, %v977
        %v979 = vadd.f32 %v975, %v978
        %vm980 = vweird.f32 %v917
        %vm981 = vweird.f32 %v975
        %vm982 = vmor %vm980, %vm981
        %v983 = vsel %vm982, %v975, %v979
        %v984 = vand.u32 2147483647, %v917
        %vm985 = vcmp.eq.f32.partialorder %v984, 8.507059e+37
        %v986 = vand.u32 %v917, 2147483648
        %v987 = vor.u32 1.1754944e-38, %v986
        %v988 = vsel %vm985, %v987, %v983
        %v989 = vmul.f32 1.0, %v988
        %v990 = vrcp.pop %v918
        %v991 = vmul.f32 %v918, %v990
        %v992 = vsub.f32 1.0, %v991
        %v993 = vmul.f32 %v990, %v992
        %v994 = vadd.f32 %v990, %v993
        %vm995 = vweird.f32 %v918
        %vm996 = vweird.f32 %v990
        %vm997 = vmor %vm995, %vm996
        %v998 = vsel %vm997, %v990, %v994
        %v999 = vand.u32 2147483647, %v918
        %vm1000 = vcmp.eq.f32.partialorder %v999, 8.507059e+37
        %v1001 = vand.u32 %v918, 2147483648
        %v1002 = vor.u32 1.1754944e-38, %v1001
        %v1003 = vsel %vm1000, %v1002, %v998
        %v1004 = vmul.f32 1.0, %v1003
        %v1005 = vrcp.pop %v919
        %v1006 = vmul.f32 %v919, %v1005
        %v1007 = vsub.f32 1.0, %v1006
        %v1008 = vmul.f32 %v1005, %v1007
        %v1009 = vadd.f32 %v1005, %v1008
        %vm1010 = vweird.f32 %v919
        %vm1011 = vweird.f32 %v1005
        %vm1012 = vmor %vm1010, %vm1011
        %v1013 = vsel %vm1012, %v1005, %v1009
        %v1014 = vand.u32 2147483647, %v919
        %vm1015 = vcmp.eq.f32.partialorder %v1014, 8.507059e+37
        %v1016 = vand.u32 %v919, 2147483648
        %v1017 = vor.u32 1.1754944e-38, %v1016
        %v1018 = vsel %vm1015, %v1017, %v1013
        %v1019 = vmul.f32 1.0, %v1018
        %v1020 = vrcp.pop %v920
        %v1021 = vmul.f32 %v920, %v1020
        %v1022 = vsub.f32 1.0, %v1021
        %v1023 = vmul.f32 %v1020, %v1022
        %v1024 = vadd.f32 %v1020, %v1023
        %vm1025 = vweird.f32 %v920
        %vm1026 = vweird.f32 %v1020
        %vm1027 = vmor %vm1025, %vm1026
        %v1028 = vsel %vm1027, %v1020, %v1024
        %v1029 = vand.u32 2147483647, %v920
        %vm1030 = vcmp.eq.f32.partialorder %v1029, 8.507059e+37
        %v1031 = vand.u32 %v920, 2147483648
        %v1032 = vor.u32 1.1754944e-38, %v1031
        %v1033 = vsel %vm1030, %v1032, %v1028
        %v1034 = vmul.f32 1.0, %v1033
        %v1035 = vrcp.pop %v921
        %v1036 = vmul.f32 %v921, %v1035
        %v1037 = vsub.f32 1.0, %v1036
        %v1038 = vmul.f32 %v1035, %v1037
        %v1039 = vadd.f32 %v1035, %v1038
        %vm1040 = vweird.f32 %v921
        %vm1041 = vweird.f32 %v1035
        %vm1042 = vmor %vm1040, %vm1041
        %v1043 = vsel %vm1042, %v1035, %v1039
        %v1044 = vand.u32 2147483647, %v921
        %vm1045 = vcmp.eq.f32.partialorder %v1044, 8.507059e+37
        %v1046 = vand.u32 %v921, 2147483648
        %v1047 = vor.u32 1.1754944e-38, %v1046
        %v1048 = vsel %vm1045, %v1047, %v1043
        %v1049 = vmul.f32 1.0, %v1048
        %v1050 = vrcp.pop %v922
        %v1051 = vmul.f32 %v922, %v1050
        %v1052 = vsub.f32 1.0, %v1051
        %v1053 = vmul.f32 %v1050, %v1052
        %v1054 = vadd.f32 %v1050, %v1053
        %vm1055 = vweird.f32 %v922
        %vm1056 = vweird.f32 %v1050
        %vm1057 = vmor %vm1055, %vm1056
        %v1058 = vsel %vm1057, %v1050, %v1054
        %v1059 = vand.u32 2147483647, %v922
        %vm1060 = vcmp.eq.f32.partialorder %v1059, 8.507059e+37
        %v1061 = vand.u32 %v922, 2147483648
        %v1062 = vor.u32 1.1754944e-38, %v1061
        %v1063 = vsel %vm1060, %v1062, %v1058
        %v1064 = vmul.f32 1.0, %v1063
        %v1065 = vrcp.pop %v923
        %v1066 = vmul.f32 %v923, %v1065
        %v1067 = vsub.f32 1.0, %v1066
        %v1068 = vmul.f32 %v1065, %v1067
        %v1069 = vadd.f32 %v1065, %v1068
        %vm1070 = vweird.f32 %v923
        %vm1071 = vweird.f32 %v1065
        %vm1072 = vmor %vm1070, %vm1071
        %v1073 = vsel %vm1072, %v1065, %v1069
        %v1074 = vand.u32 2147483647, %v923
        %vm1075 = vcmp.eq.f32.partialorder %v1074, 8.507059e+37
        %v1076 = vand.u32 %v923, 2147483648
        %v1077 = vor.u32 1.1754944e-38, %v1076
        %v1078 = vsel %vm1075, %v1077, %v1073
        %v1079 = vmul.f32 1.0, %v1078
        %v1080 = vrcp.pop %v924
        %v1081 = vmul.f32 %v924, %v1080
        %v1082 = vsub.f32 1.0, %v1081
        %v1083 = vmul.f32 %v1080, %v1082
        %v1084 = vadd.f32 %v1080, %v1083
        %vm1085 = vweird.f32 %v924
        %vm1086 = vweird.f32 %v1080
        %vm1087 = vmor %vm1085, %vm1086
        %v1088 = vsel %vm1087, %v1080, %v1084
        %v1089 = vand.u32 2147483647, %v924
        %vm1090 = vcmp.eq.f32.partialorder %v1089, 8.507059e+37
        %v1091 = vand.u32 %v924, 2147483648
        %v1092 = vor.u32 1.1754944e-38, %v1091
        %v1093 = vsel %vm1090, %v1092, %v1088
        %v1094 = vmul.f32 1.0, %v1093
        %v1095 = vrcp.pop %v925
        %v1096 = vmul.f32 %v925, %v1095
        %v1097 = vsub.f32 1.0, %v1096
        %v1098 = vmul.f32 %v1095, %v1097
        %v1099 = vadd.f32 %v1095, %v1098
        %vm1100 = vweird.f32 %v925
        %vm1101 = vweird.f32 %v1095
        %vm1102 = vmor %vm1100, %vm1101
        %v1103 = vsel %vm1102, %v1095, %v1099
        %v1104 = vand.u32 2147483647, %v925
        %vm1105 = vcmp.eq.f32.partialorder %v1104, 8.507059e+37
        %v1106 = vand.u32 %v925, 2147483648
        %v1107 = vor.u32 1.1754944e-38, %v1106
        %v1108 = vsel %vm1105, %v1107, %v1103
        %v1109 = vmul.f32 1.0, %v1108
        %v1110 = vrcp.pop %v926
        %v1111 = vmul.f32 %v926, %v1110
        %v1112 = vsub.f32 1.0, %v1111
        %v1113 = vmul.f32 %v1110, %v1112
        %v1114 = vadd.f32 %v1110, %v1113
        %vm1115 = vweird.f32 %v926
        %vm1116 = vweird.f32 %v1110
        %vm1117 = vmor %vm1115, %vm1116
        %v1118 = vsel %vm1117, %v1110, %v1114
        %v1119 = vand.u32 2147483647, %v926
        %vm1120 = vcmp.eq.f32.partialorder %v1119, 8.507059e+37
        %v1121 = vand.u32 %v926, 2147483648
        %v1122 = vor.u32 1.1754944e-38, %v1121
        %v1123 = vsel %vm1120, %v1122, %v1118
        %v1124 = vmul.f32 1.0, %v1123
        %v1125 = vrcp.pop %v927
        %v1126 = vmul.f32 %v927, %v1125
        %v1127 = vsub.f32 1.0, %v1126
        %v1128 = vmul.f32 %v1125, %v1127
        %v1129 = vadd.f32 %v1125, %v1128
        %vm1130 = vweird.f32 %v927
        %vm1131 = vweird.f32 %v1125
        %vm1132 = vmor %vm1130, %vm1131
        %v1133 = vsel %vm1132, %v1125, %v1129
        %v1134 = vand.u32 2147483647, %v927
        %vm1135 = vcmp.eq.f32.partialorder %v1134, 8.507059e+37
        %v1136 = vand.u32 %v927, 2147483648
        %v1137 = vor.u32 1.1754944e-38, %v1136
        %v1138 = vsel %vm1135, %v1137, %v1133
        %v1139 = vmul.f32 1.0, %v1138
        %v1140 = vrcp.pop %v928
        %v1141 = vmul.f32 %v928, %v1140
        %v1142 = vsub.f32 1.0, %v1141
        %v1143 = vmul.f32 %v1140, %v1142
        %v1144 = vadd.f32 %v1140, %v1143
        %vm1145 = vweird.f32 %v928
        %vm1146 = vweird.f32 %v1140
        %vm1147 = vmor %vm1145, %vm1146
        %v1148 = vsel %vm1147, %v1140, %v1144
        %v1149 = vand.u32 2147483647, %v928
        %vm1150 = vcmp.eq.f32.partialorder %v1149, 8.507059e+37
        %v1151 = vand.u32 %v928, 2147483648
        %v1152 = vor.u32 1.1754944e-38, %v1151
        %v1153 = vsel %vm1150, %v1152, %v1148
        %v1154 = vmul.f32 1.0, %v1153
        %v1155 = vrcp.pop %v929
        %v1156 = vmul.f32 %v929, %v1155
        %v1157 = vsub.f32 1.0, %v1156
        %v1158 = vmul.f32 %v1155, %v1157
        %v1159 = vadd.f32 %v1155, %v1158
        %vm1160 = vweird.f32 %v929
        %vm1161 = vweird.f32 %v1155
        %vm1162 = vmor %vm1160, %vm1161
        %v1163 = vsel %vm1162, %v1155, %v1159
        %v1164 = vand.u32 2147483647, %v929
        %vm1165 = vcmp.eq.f32.partialorder %v1164, 8.507059e+37
        %v1166 = vand.u32 %v929, 2147483648
        %v1167 = vor.u32 1.1754944e-38, %v1166
        %v1168 = vsel %vm1165, %v1167, %v1163
        %v1169 = vmul.f32 1.0, %v1168
        %v1170 = vmul.f32 %v827, %v944
        %v1171 = vmul.f32 %v829, %v959
        %v1172 = vmul.f32 %v832, %v974
        %v1173 = vmul.f32 %v834, %v989
        %v1174 = vmul.f32 %v837, %v1004
        %v1175 = vmul.f32 %v839, %v1019
        %v1176 = vmul.f32 %v842, %v1034
        %v1177 = vmul.f32 %v844, %v1049
        %v1178 = vmul.f32 %v847, %v1064
        %v1179 = vmul.f32 %v849, %v1079
        %v1180 = vmul.f32 %v852, %v1094
        %v1181 = vmul.f32 %v854, %v1109
        %v1182 = vmul.f32 %v857, %v1124
        %v1183 = vmul.f32 %v859, %v1139
        %v1184 = vmul.f32 %v862, %v1154
        %v1185 = vmul.f32 %v864, %v1169
        %v1186 = vpack.c.bf16 %v1171, %v1170
        %v1187 = vpack.c.bf16 %v1173, %v1172
        %v1188 = vpack.c.bf16 %v1175, %v1174
        %v1189 = vpack.c.bf16 %v1177, %v1176
        %v1190 = vpack.c.bf16 %v1179, %v1178
        %v1191 = vpack.c.bf16 %v1181, %v1180
        %v1192 = vpack.c.bf16 %v1183, %v1182
        %v1193 = vpack.c.bf16 %v1185, %v1184
        %v1194 = vld [vmem:[#allocation4] sm:$0xf]
        %v1195 = vld [vmem:[#allocation4 + $0x4] sm:$0xf]
        %v1196 = vld [vmem:[#allocation4 + $0x8] sm:$0xf]
        %v1197 = vld [vmem:[#allocation4 + $0xc] sm:$0xf]
        %v1198 = vld [vmem:[#allocation4 + $0x10] sm:$0xf]
        %v1199 = vld [vmem:[#allocation4 + $0x14] sm:$0xf]
        %v1200 = vld [vmem:[#allocation4 + $0x18] sm:$0xf]
        %v1201 = vld [vmem:[#allocation4 + $0x1c] sm:$0xf]
        %v1202 = vld [vmem:[#allocation4 + $0x20] sm:$0xf]
        %v1203 = vld [vmem:[#allocation4 + $0x24] sm:$0xf]
        %v1204 = vld [vmem:[#allocation4 + $0x28] sm:$0xf]
        %v1205 = vld [vmem:[#allocation4 + $0x2c] sm:$0xf]
        %v1206 = vld [vmem:[#allocation4 + $0x30] sm:$0xf]
        %v1207 = vld [vmem:[#allocation4 + $0x34] sm:$0xf]
        %v1208 = vld [vmem:[#allocation4 + $0x38] sm:$0xf]
        %v1209 = vld [vmem:[#allocation4 + $0x3c] sm:$0xf]
        %v1210 = vld [vmem:[%s4] sm:$0x1]
        %v1212 = vperm.slane %v1210, 0
        %v1230 = vunpack.c.l.b16 %v1194
        %v1231 = vunpack.c.l.b16 %v1195
        %v1232 = vunpack.c.l.b16 %v1196
        %v1233 = vunpack.c.l.b16 %v1197
        %v1234 = vunpack.c.l.b16 %v1198
        %v1235 = vunpack.c.l.b16 %v1199
        %v1236 = vunpack.c.l.b16 %v1200
        %v1237 = vunpack.c.l.b16 %v1201
        %v1238 = vunpack.c.l.b16 %v1202
        %v1239 = vunpack.c.l.b16 %v1203
        %v1240 = vunpack.c.l.b16 %v1204
        %v1241 = vunpack.c.l.b16 %v1205
        %v1242 = vunpack.c.l.b16 %v1206
        %v1243 = vunpack.c.l.b16 %v1207
        %v1244 = vunpack.c.l.b16 %v1208
        %v1245 = vunpack.c.l.b16 %v1209
        %v1246 = vpack.c.b16 %v1231, %v1230
        %v1247 = vpack.c.b16 %v1233, %v1232
        %v1248 = vpack.c.b16 %v1235, %v1234
        %v1249 = vpack.c.b16 %v1237, %v1236
        %v1250 = vpack.c.b16 %v1239, %v1238
        %v1251 = vpack.c.b16 %v1241, %v1240
        %v1252 = vpack.c.b16 %v1243, %v1242
        %v1253 = vpack.c.b16 %v1245, %v1244
        %1262 = vmatpush.bf16.msra.mxu0 %v1253
        %1263 = vmatpush.bf16.msra.mxu0 %v1252
        %1264 = vmatpush.bf16.msra.mxu0 %v1251
        %1265 = vmatpush.bf16.msra.mxu0 %v1250
        %1266 = vmatpush.bf16.msra.mxu0 %v1249
        %1267 = vmatpush.bf16.msra.mxu0 %v1248
        %1268 = vmatpush.bf16.msra.mxu0 %v1247
        %1269 = vmatpush.bf16.msra.mxu0 %v1246
        %1270 = vmatmul.bf16.gmra.mxu0 %v1186
        %v1271 = vpop.f32.mrf.mxu0
        %v1272 = vadd.f32 %v1212, %v1271
        %v1273 = vpop.f32.mrf.mxu0
        %v1274 = vadd.f32 %v1212, %v1273
        %1275 = vmatmul.bf16.gmra.mxu0 %v1187
        %v1276 = vpop.f32.mrf.mxu0
        %v1277 = vadd.f32 %v1212, %v1276
        %v1278 = vpop.f32.mrf.mxu0
        %v1279 = vadd.f32 %v1212, %v1278
        %1280 = vmatmul.bf16.gmra.mxu0 %v1188
        %v1281 = vpop.f32.mrf.mxu0
        %v1282 = vadd.f32 %v1212, %v1281
        %v1283 = vpop.f32.mrf.mxu0
        %v1284 = vadd.f32 %v1212, %v1283
        %1285 = vmatmul.bf16.gmra.mxu0 %v1189
        %v1286 = vpop.f32.mrf.mxu0
        %v1287 = vadd.f32 %v1212, %v1286
        %v1288 = vpop.f32.mrf.mxu0
        %v1289 = vadd.f32 %v1212, %v1288
        %1290 = vmatmul.bf16.gmra.mxu0 %v1190
        %v1291 = vpop.f32.mrf.mxu0
        %v1292 = vadd.f32 %v1212, %v1291
        %v1293 = vpop.f32.mrf.mxu0
        %v1294 = vadd.f32 %v1212, %v1293
        %1295 = vmatmul.bf16.gmra.mxu0 %v1191
        %v1296 = vpop.f32.mrf.mxu0
        %v1297 = vadd.f32 %v1212, %v1296
        %v1298 = vpop.f32.mrf.mxu0
        %v1299 = vadd.f32 %v1212, %v1298
        %1300 = vmatmul.bf16.gmra.mxu0 %v1192
        %v1301 = vpop.f32.mrf.mxu0
        %v1302 = vadd.f32 %v1212, %v1301
        %v1303 = vpop.f32.mrf.mxu0
        %v1304 = vadd.f32 %v1212, %v1303
        %1305 = vmatmul.bf16.gmra.mxu0 %v1193
        %v1306 = vpop.f32.mrf.mxu0
        %v1307 = vadd.f32 %v1212, %v1306
        %v1308 = vpop.f32.mrf.mxu0
        %v1309 = vadd.f32 %v1212, %v1308
        %1310 = vdwg.mxu0
        %1311 = vst [vmem:[%s188] sm:$0xff] %v1272
        %1312 = vst [vmem:[%s188 + $0x8] sm:$0xff] %v1274
        %1313 = vst [vmem:[%s188 + $0x10] sm:$0xff] %v1277
        %1314 = vst [vmem:[%s188 + $0x18] sm:$0xff] %v1279
        %1315 = vst [vmem:[%s188 + $0x20] sm:$0xff] %v1282
        %1316 = vst [vmem:[%s188 + $0x28] sm:$0xff] %v1284
        %1317 = vst [vmem:[%s188 + $0x30] sm:$0xff] %v1287
        %1318 = vst [vmem:[%s188 + $0x38] sm:$0xff] %v1289
        %1319 = vst [vmem:[%s188 + $0x40] sm:$0xff] %v1292
        %1320 = vst [vmem:[%s188 + $0x48] sm:$0xff] %v1294
        %1321 = vst [vmem:[%s188 + $0x50] sm:$0xff] %v1297
        %1322 = vst [vmem:[%s188 + $0x58] sm:$0xff] %v1299
        %1323 = vst [vmem:[%s188 + $0x60] sm:$0xff] %v1302
        %1324 = vst [vmem:[%s188 + $0x68] sm:$0xff] %v1304
        %1325 = vst [vmem:[%s188 + $0x70] sm:$0xff] %v1307
        %1326 = vst [vmem:[%s188 + $0x78] sm:$0xff] %v1309
        %s1327 = sand.u32 %s97, 1
        %s1328 = scalar_lea.sflag [#allocation8], %s1327
        %s1329 = sand.u32 %s97, 1
        %s1330 = smul.addr %s1329, 128
        %s1331 = scalar_lea.vmem [#allocation9], %s1330
        // Predicated region
        $region49: #{tpu_custom_call.1} parent=27 // pred_check
          %p1332 = pneg %p107
        $region50: #{tpu_custom_call.1} parent=27 // pred_check_branch
          %1334 = sbr.rel (%p1332) target = $region52
        $region51: #{tpu_custom_call.1} parent=27 // pred_region
          %s1335 = smul.u32 %s26, 2
          %s1336 = sadd.s32 %s1335, %s27
          %s1337 = smul.u32 16, %s1336
          %1339 = vsyncadd %s1328, 0
          %s1340 = smul.addr %s1337, 8
          %s1341 = scalar_lea.hbm %s5, %s1340
          %s1342 = sshll.u32 %s1331, 4
          %s1343 = int_to_ptr.vmem [resolvable:$true] %s1342
          %s1344 = sshll.u32 %s1341, 4
          %s1345 = int_to_ptr.hbm [resolvable:$true] %s1344
          %1350 = dma.vmem_to_hbm [thread:$0]  %s1343, 2048, %s1345, %s1328, 128, 128, 8
        $region52: #{tpu_custom_call.1} parent=27 // pred_fallthru
          _
      $region28: #{tpu_custom_call.1} parent=5 // pred_fallthru
        _
      %p1351 = scmp.le.s32.totalorder 2, %s17
      // Predicated region
      $region53: #{tpu_custom_call.1} parent=5 // pred_check
        %p1352 = pneg %p1351
      $region54: #{tpu_custom_call.1} parent=5 // pred_check_branch
        %1354 = sbr.rel (%p1352) target = $region56
      $region55: #{tpu_custom_call.1} parent=5 // pred_region
        %s1355 = ssub.s32 %s17, 2
        // Predicated region
        $region57: #{tpu_custom_call.1} parent=55 // pred_check
          %p1356 = pneg %p113
        $region58: #{tpu_custom_call.1} parent=55 // pred_check_branch
          %1358 = sbr.rel (%p1356) target = $region60
        $region59: #{tpu_custom_call.1} parent=55 // pred_region
          %s1359 = sand.u32 %s98, 1
          %s1360 = scalar_lea.sflag [#allocation8], %s1359
          %s1361 = sand.u32 %s98, 1
          %s1362 = smul.addr %s1361, 128
          %s1363 = scalar_lea.vmem [#allocation9], %s1362
          %1365 = dma.done %s1360, 2048
        $region60: #{tpu_custom_call.1} parent=55 // pred_fallthru
          _
      $region56: #{tpu_custom_call.1} parent=5 // pred_fallthru
        _
    $region6: #{tpu_custom_call.1} parent=1 // loop_footer
      %s21 = sadd.s32 1, %s17
    $region7: #{tpu_custom_call.1} parent=1 // loop_footer_branch
      %16 = sbr.rel target = $region3
    $region8: #{tpu_custom_call.1} parent=1 // loop_exit
      _
    %1366 = vsyncpa [#allocation7], 1
    %s1367 = scalar_lea.sflag [#allocation7], 1
    %1368 = vsyncpa %s1367, 1
    %1369 = vsyncpa [#allocation8], 1
    %s1370 = scalar_lea.sflag [#allocation8], 1
    %1371 = vsyncpa %s1370, 1
  %1372 = vsyncmov [#allocation5]
  %s1373 = vpop.sfrf %1372
  %p1374 = scmp.eq.s32.totalorder %s1373, 0
  %p1375 = pneg %p1374
  %1377 = shalt.err (%p1375)
  %s1378 = scalar_lea.sflag [#allocation5], 1
  %1379 = vsyncmov %s1378
  %s1380 = vpop.sfrf %1379
  %p1381 = scmp.eq.s32.totalorder %s1380, 0
  %p1382 = pneg %p1381
  %1384 = shalt.err (%p1382)
  %s1385 = scalar_lea.sflag [#allocation5], 2
  %1386 = vsyncmov %s1385
  %s1387 = vpop.sfrf %1386
  %p1388 = scmp.eq.s32.totalorder %s1387, 0
  %p1389 = pneg %p1388
  %1391 = shalt.err (%p1389)

</llo_original>
